<compile_context>
chip_gen: v5e
topology: v5e:2x2
jax: 0.10.0
libtpu: 0.0.40
codegen_flags: <defaults>
</compile_context>

<pallas_src>
import jax
import jax.numpy as jnp
from jax.experimental import pallas as pl
from jax.experimental.pallas import tpu as pltpu

LANE = 128
SUBLANE = 8
BN_EPS = 1e-5


def _round_up(n, m):
    return ((n + m - 1) // m) * m


def _vmem_limit_bytes():
    try:
        cap = pltpu.get_tpu_info().vmem_capacity_bytes
    except Exception:  # pragma: no cover - conservative fallback
        cap = 64 << 20
    return int(min(100 << 20, (cap * 3) // 4))


# --------------------------------------------------------------------------------------
# Kernel 1: (BN-apply of previous layer) + DenseGCNConv + ReLU + per-graph BN statistics.
# One grid step == one graph.  Layer 1 passes identity BN parameters.
# --------------------------------------------------------------------------------------
def _gcn_layer_kernel(x_ref, adj_ref, mean_ref, inv_ref, g_ref, be_ref, w_ref, b_ref,
                      h_ref, pmean_ref, pm2_ref):
    N = adj_ref.shape[1]
    mxu = w_ref.dtype

    # BN-apply of the previous layer's activation (identity params for layer 1).
    x = x_ref[0].astype(jnp.float32)                                     # (N, Cin_p)
    x = (x - mean_ref[...]) * inv_ref[...] * g_ref[...] + be_ref[...]

    # Self loops: diagonal forced to 1 (exact in bf16); degrees accumulated in f32.
    adj = adj_ref[0]                                                     # (N, N)
    row = jax.lax.broadcasted_iota(jnp.int32, (N, N), 0)
    col = jax.lax.broadcasted_iota(jnp.int32, (N, N), 1)
    adj = jnp.where(row == col, 1.0, adj)
    deg = jnp.sum(adj, axis=-1, keepdims=True, dtype=jnp.float32)        # (N, 1)
    dinv = jax.lax.rsqrt(jnp.maximum(deg, 1.0))                          # clamp(min=1)**-0.5

    # Feature transform; D^{-1/2} A' D^{-1/2} folded into the feature path.
    h = jnp.dot(x.astype(mxu), w_ref[...], preferred_element_type=jnp.float32)
    h = jnp.dot(adj.astype(mxu), (h * dinv).astype(mxu),
                preferred_element_type=jnp.float32)
    h = jnp.maximum(h * dinv + b_ref[...], 0.0)                          # (N, Cout_p), f32

    # Per-graph BN partial statistics (two-pass inside the graph; stable combine later).
    m = jnp.sum(h, axis=0, keepdims=True) / jnp.float32(N)               # (1, Cout_p)
    d = h - m
    pmean_ref[0] = m
    pm2_ref[0] = jnp.sum(d * d, axis=0, keepdims=True)
    h_ref[0] = h.astype(h_ref.dtype)


# --------------------------------------------------------------------------------------
# Kernel 2 (head): BN-apply x3 + concat + Linear + ReLU.  One grid step == one graph.
# --------------------------------------------------------------------------------------
def _head_kernel(h1_ref, h2_ref, h4_ref,
                 m1_ref, i1_ref, g1_ref, be1_ref,
                 m2_ref, i2_ref, g2_ref, be2_ref,
                 m4_ref, i4_ref, g4_ref, be4_ref,
                 wl_ref, bl_ref, out_ref):
    mxu = wl_ref.dtype

    def bn(h_ref, m_ref, i_ref, g_ref, be_ref):
        x = h_ref[0].astype(jnp.float32)
        return ((x - m_ref[...]) * i_ref[...] * g_ref[...] + be_ref[...]).astype(mxu)

    x1 = bn(h1_ref, m1_ref, i1_ref, g1_ref, be1_ref)      # (N, Hp)
    x2 = bn(h2_ref, m2_ref, i2_ref, g2_ref, be2_ref)      # (N, Hp)
    x4 = bn(h4_ref, m4_ref, i4_ref, g4_ref, be4_ref)      # (N, Cp)

    # Segments are 128-lane aligned -> one K = 2*Hp+Cp matmul, no relayout.
    cat = jnp.concatenate([x1, x2, x4], axis=-1)
    out = jnp.dot(cat, wl_ref[...], preferred_element_type=jnp.float32) + bl_ref[...]
    out_ref[0] = jnp.maximum(out, 0.0).astype(out_ref.dtype)


# --------------------------------------------------------------------------------------
# pallas_call builders
# --------------------------------------------------------------------------------------
def _full(a):
    zeros = (0,) * a.ndim
    return pl.BlockSpec(a.shape, lambda b, _z=zeros: _z)


def _gcn_layer(x, adj, bn_mean, bn_inv, gamma, beta, w, bias, *, h_dtype, vmem_limit):
    B, N, Cin_p = x.shape
    Cout_p = w.shape[1]
    h, pmean, pm2 = pl.pallas_call(
        _gcn_layer_kernel,
        grid=(B,),
        in_specs=[
            pl.BlockSpec((1, N, Cin_p), lambda b: (b, 0, 0)),
            pl.BlockSpec((1, N, N), lambda b: (b, 0, 0)),
            _full(bn_mean), _full(bn_inv), _full(gamma), _full(beta),
            _full(w), _full(bias),
        ],
        out_specs=[
            pl.BlockSpec((1, N, Cout_p), lambda b: (b, 0, 0)),
            pl.BlockSpec((1, 1, Cout_p), lambda b: (b, 0, 0)),
            pl.BlockSpec((1, 1, Cout_p), lambda b: (b, 0, 0)),
        ],
        out_shape=[
            jax.ShapeDtypeStruct((B, N, Cout_p), h_dtype),
            jax.ShapeDtypeStruct((B, 1, Cout_p), jnp.float32),
            jax.ShapeDtypeStruct((B, 1, Cout_p), jnp.float32),
        ],
        compiler_params=pltpu.CompilerParams(
            dimension_semantics=("parallel",),
            vmem_limit_bytes=vmem_limit),
    )(x, adj, bn_mean, bn_inv, gamma, beta, w, bias)
    return h, pmean, pm2


def _gnn_head(h1, h2, h4, bn1, bn2, bn4, wl, bl, *, vmem_limit):
    B, N, Hp = h1.shape
    Cp = h4.shape[2]
    params = (*bn1, *bn2, *bn4, wl, bl)
    return pl.pallas_call(
        _head_kernel,
        grid=(B,),
        in_specs=[
            pl.BlockSpec((1, N, Hp), lambda b: (b, 0, 0)),
            pl.BlockSpec((1, N, Hp), lambda b: (b, 0, 0)),
            pl.BlockSpec((1, N, Cp), lambda b: (b, 0, 0)),
        ] + [_full(p) for p in params],
        out_specs=pl.BlockSpec((1, N, Cp), lambda b: (b, 0, 0)),
        out_shape=jax.ShapeDtypeStruct((B, N, Cp), jnp.float32),
        compiler_params=pltpu.CompilerParams(
            dimension_semantics=("parallel",),
            vmem_limit_bytes=vmem_limit),
    )(h1, h2, h4, *params)


def _bn_combine(pmean, pm2, n_nodes):
    """Chan's parallel combine of per-graph (mean, M2) -> global (mean, invstd)."""
    mean = jnp.mean(pmean, axis=0)                                         # (1, C)
    m2 = jnp.sum(pm2, axis=0) + n_nodes * jnp.sum((pmean - mean) ** 2, axis=0)
    var = m2 / (pmean.shape[0] * n_nodes)                                  # biased (training mode)
    return mean, jax.lax.rsqrt(var + BN_EPS)


# --------------------------------------------------------------------------------------
# Forward wrapper
# --------------------------------------------------------------------------------------
def gnn_forward(x, adj, params, *, mxu_dtype=jnp.bfloat16, adj_dtype=jnp.bfloat16):
    """GNN forward.  x: (B,N,Cin) f32, adj: (B,N,N) f32, params: dict of arrays.

    Output-channel (lane) dims are zero-padded to 128 (exact: padded channels stay 0
    through conv / ReLU / BN / Linear) and trimmed after the call; the input-channel
    dim is padded only to the f32 sublane tile.  mxu_dtype controls matmul-operand /
    inter-layer-activation precision (f32 accumulation everywhere); adj_dtype=bf16 is
    exact for 0/1 adjacencies — pass jnp.float32 for weighted graphs.
    """
    B, N, Cin = x.shape
    H = params['w1'].shape[1]
    C = params['w4'].shape[1]
    Cin_p = _round_up(Cin, SUBLANE)
    Hp = _round_up(H, LANE)
    Cp = _round_up(C, LANE)
    vmem_limit = _vmem_limit_bytes()

    xp = jnp.pad(x, ((0, 0), (0, 0), (0, Cin_p - Cin)))
    adj_k = adj.astype(adj_dtype)

    def wpad(a, rows, cols):
        return jnp.pad(a, ((0, rows - a.shape[0]), (0, cols - a.shape[1]))).astype(mxu_dtype)

    def vpad(a, cols):
        return jnp.pad(a, ((0, 0), (0, cols - a.shape[1])))

    w1, b1 = wpad(params['w1'], Cin_p, Hp), vpad(params['b1'], Hp)
    w2, b2 = wpad(params['w2'], Hp, Hp), vpad(params['b2'], Hp)
    w4, b4 = wpad(params['w4'], Hp, Cp), vpad(params['b4'], Cp)
    g1, be1 = vpad(params['g1'], Hp), vpad(params['be1'], Hp)
    g2, be2 = vpad(params['g2'], Hp), vpad(params['be2'], Hp)
    g4, be4 = vpad(params['g4'], Cp), vpad(params['be4'], Cp)

    # Final-linear weight stacked at 128-aligned row offsets matching concat([x1,x2,x4]).
    wl = params['wl']
    wl_stacked = jnp.zeros((2 * Hp + Cp, Cp), jnp.float32)
    wl_stacked = wl_stacked.at[:H, :C].set(wl[:H])
    wl_stacked = wl_stacked.at[Hp:Hp + H, :C].set(wl[H:2 * H])
    wl_stacked = wl_stacked.at[2 * Hp:2 * Hp + C, :C].set(wl[2 * H:])
    wl_stacked = wl_stacked.astype(mxu_dtype)
    bl = vpad(params['bl'], Cp)

    # Identity BN params for layer 1's (no-op) input normalization.
    id_mean = jnp.zeros((1, Cin_p), jnp.float32)
    id_one = jnp.ones((1, Cin_p), jnp.float32)
    id_zero = jnp.zeros((1, Cin_p), jnp.float32)

    h_dtype = mxu_dtype  # inter-layer activations are only consumed as MXU operands

    h1, p1m, p1q = _gcn_layer(xp, adj_k, id_mean, id_one, id_one, id_zero, w1, b1,
                              h_dtype=h_dtype, vmem_limit=vmem_limit)
    m1, i1 = _bn_combine(p1m, p1q, N)

    h2, p2m, p2q = _gcn_layer(h1, adj_k, m1, i1, g1, be1, w2, b2,
                              h_dtype=h_dtype, vmem_limit=vmem_limit)
    m2, i2 = _bn_combine(p2m, p2q, N)

    h4, p4m, p4q = _gcn_layer(h2, adj_k, m2, i2, g2, be2, w4, b4,
                              h_dtype=h_dtype, vmem_limit=vmem_limit)
    m4, i4 = _bn_combine(p4m, p4q, N)

    out = _gnn_head(h1, h2, h4,
                    (m1, i1, g1, be1), (m2, i2, g2, be2), (m4, i4, g4, be4),
                    wl_stacked, bl, vmem_limit=vmem_limit)
    return out[..., :C]


# --------------------------------------------------------------------------------------
# Parameters + pure-JAX reference (for validation)
# --------------------------------------------------------------------------------------
def init_params(key, in_channels, hidden_channels, out_channels):
    """Deterministic synthetic parameter init (glorot-uniform weights, zero biases)."""
    def glorot(k, fan_in, fan_out):
        limit = (6.0 / (fan_in + fan_out)) ** 0.5
        return jax.random.uniform(k, (fan_in, fan_out), jnp.float32, -limit, limit)

    ks = jax.random.split(key, 8)
    H, C = hidden_channels, out_channels
    lin_in = 2 * H + C
    return {
        'w1': glorot(ks[0], in_channels, H), 'b1': jnp.zeros((1, H), jnp.float32),
        'g1': jnp.ones((1, H), jnp.float32), 'be1': jnp.zeros((1, H), jnp.float32),
        'w2': glorot(ks[1], H, H),           'b2': jnp.zeros((1, H), jnp.float32),
        'g2': jnp.ones((1, H), jnp.float32), 'be2': jnp.zeros((1, H), jnp.float32),
        'w4': glorot(ks[2], H, C),           'b4': jnp.zeros((1, C), jnp.float32),
        'g4': jnp.ones((1, C), jnp.float32), 'be4': jnp.zeros((1, C), jnp.float32),
        'wl': glorot(ks[3], lin_in, C),
        'bl': jax.random.uniform(ks[4], (1, C), jnp.float32,
                                 -1.0 / lin_in ** 0.5, 1.0 / lin_in ** 0.5),
    }


def _gnn_reference(x, adj, params):
    hi = jax.lax.Precision.HIGHEST

    def gcn(h, w, b):
        N = adj.shape[-1]
        a = jnp.where(jnp.eye(N, dtype=bool), 1.0, adj)
        dinv = jnp.maximum(a.sum(-1), 1.0) ** -0.5
        a_n = dinv[:, :, None] * a * dinv[:, None, :]
        h = jnp.einsum('bnc,cd->bnd', h, w, precision=hi)
        return jnp.einsum('bnm,bmd->bnd', a_n, h, precision=hi) + b

    def bn(h, g, be):
        hf = h.reshape(-1, h.shape[-1])
        mean = hf.mean(0)
        var = ((hf - mean) ** 2).mean(0)
        return (h - mean) * jax.lax.rsqrt(var + BN_EPS) * g + be

    x1 = bn(jax.nn.relu(gcn(x, params['w1'], params['b1'])), params['g1'], params['be1'])
    x2 = bn(jax.nn.relu(gcn(x1, params['w2'], params['b2'])), params['g2'], params['be2'])
    x4 = bn(jax.nn.relu(gcn(x2, params['w4'], params['b4'])), params['g4'], params['be4'])
    cat = jnp.concatenate([x1, x2, x4], axis=-1)
    return jax.nn.relu(jnp.einsum('bnk,kc->bnc', cat, params['wl'], precision=hi)
                       + params['bl'])


if __name__ == "__main__":
    B, N = 2, 16
    in_channels, hidden_channels, out_channels = 4, 32, 16

    key = jax.random.PRNGKey(0)
    k_x, k_adj, k_params = jax.random.split(key, 3)

    x = jax.random.normal(k_x, (B, N, in_channels), jnp.float32)
    # symmetric 0/1 adjacency (self loops are forced to 1 inside the kernel anyway)
    a = (jax.random.uniform(k_adj, (B, N, N)) > 0.7).astype(jnp.float32)
    adj = jnp.maximum(a, jnp.swapaxes(a, -1, -2))

    params = init_params(k_params, in_channels, hidden_channels, out_channels)

    # Production path: bf16 MXU operands / bf16 adjacency, f32 accumulation.
    out = jax.jit(gnn_forward)(x, adj, params)
    jax.block_until_ready(out)
    assert out.shape == (B, N, out_channels), out.shape
    assert bool(jnp.all(jnp.isfinite(out)))

    # Validation path: full-f32 matmuls vs. a pure-JAX reference of the torch module.
    out_f32 = jax.jit(lambda x_, a_, p_: gnn_forward(
        x_, a_, p_, mxu_dtype=jnp.float32, adj_dtype=jnp.float32))(x, adj, params)
    ref = _gnn_reference(x, adj, params)
    jax.block_until_ready((out_f32, ref))
    assert jnp.allclose(out_f32, ref, rtol=5e-2, atol=5e-2), float(
        jnp.max(jnp.abs(out_f32 - ref)))

    print("KERNEL_OK")
</pallas_src>

<mosaic_0001>
module attributes {stable_mosaic.version = 11 : i64} {
  func.func @_gcn_layer_kernel(%arg0: i32, %arg1: memref<1x16x8xf32, #tpu.memory_space<vmem>>, %arg2: memref<1x16x16xbf16, #tpu.memory_space<vmem>>, %arg3: memref<1x8xf32, #tpu.memory_space<vmem>>, %arg4: memref<1x8xf32, #tpu.memory_space<vmem>>, %arg5: memref<1x8xf32, #tpu.memory_space<vmem>>, %arg6: memref<1x8xf32, #tpu.memory_space<vmem>>, %arg7: memref<8x128xbf16, #tpu.memory_space<vmem>>, %arg8: memref<1x128xf32, #tpu.memory_space<vmem>>, %arg9: memref<1x16x128xbf16, #tpu.memory_space<vmem>>, %arg10: memref<1x1x128xf32, #tpu.memory_space<vmem>>, %arg11: memref<1x1x128xf32, #tpu.memory_space<vmem>>) attributes {dimension_semantics = [#tpu.dimension_semantics<parallel>], iteration_bounds = array<i64: 2>, scalar_prefetch = 0 : i64, scratch_operands = 0 : i64, tpu.core_type = #tpu.core_type<tc>, window_params = [{transform_indices = @transform_0, window_bounds = array<i64: 1, 16, 8>}, {transform_indices = @transform_1, window_bounds = array<i64: 1, 16, 16>}, {pipeline_mode = #tpu.pipeline_mode<synchronous>, transform_indices = @transform_2, window_bounds = array<i64: 1, 8>}, {pipeline_mode = #tpu.pipeline_mode<synchronous>, transform_indices = @transform_3, window_bounds = array<i64: 1, 8>}, {pipeline_mode = #tpu.pipeline_mode<synchronous>, transform_indices = @transform_4, window_bounds = array<i64: 1, 8>}, {pipeline_mode = #tpu.pipeline_mode<synchronous>, transform_indices = @transform_5, window_bounds = array<i64: 1, 8>}, {pipeline_mode = #tpu.pipeline_mode<synchronous>, transform_indices = @transform_6, window_bounds = array<i64: 8, 128>}, {pipeline_mode = #tpu.pipeline_mode<synchronous>, transform_indices = @transform_7, window_bounds = array<i64: 1, 128>}, {transform_indices = @transform_8, window_bounds = array<i64: 1, 16, 128>}, {transform_indices = @transform_9, window_bounds = array<i64: 1, 1, 128>}, {transform_indices = @transform_10, window_bounds = array<i64: 1, 1, 128>}]} {
    %c0 = arith.constant 0 : index
    %c0_0 = arith.constant 0 : index
    %c0_1 = arith.constant 0 : index
    %0 = vector.load %arg1[%c0, %c0_0, %c0_1] : memref<1x16x8xf32, #tpu.memory_space<vmem>>, vector<1x16x8xf32>
    %1 = vector.shape_cast %0 : vector<1x16x8xf32> to vector<16x8xf32>
    %c0_2 = arith.constant 0 : index
    %c0_3 = arith.constant 0 : index
    %2 = vector.load %arg3[%c0_2, %c0_3] : memref<1x8xf32, #tpu.memory_space<vmem>>, vector<1x8xf32>
    %3 = vector.broadcast %2 : vector<1x8xf32> to vector<16x8xf32>
    %4 = arith.subf %1, %3 : vector<16x8xf32>
    %c0_4 = arith.constant 0 : index
    %c0_5 = arith.constant 0 : index
    %5 = vector.load %arg4[%c0_4, %c0_5] : memref<1x8xf32, #tpu.memory_space<vmem>>, vector<1x8xf32>
    %6 = vector.broadcast %5 : vector<1x8xf32> to vector<16x8xf32>
    %7 = arith.mulf %4, %6 : vector<16x8xf32>
    %c0_6 = arith.constant 0 : index
    %c0_7 = arith.constant 0 : index
    %8 = vector.load %arg5[%c0_6, %c0_7] : memref<1x8xf32, #tpu.memory_space<vmem>>, vector<1x8xf32>
    %9 = vector.broadcast %8 : vector<1x8xf32> to vector<16x8xf32>
    %10 = arith.mulf %7, %9 : vector<16x8xf32>
    %c0_8 = arith.constant 0 : index
    %c0_9 = arith.constant 0 : index
    %11 = vector.load %arg6[%c0_8, %c0_9] : memref<1x8xf32, #tpu.memory_space<vmem>>, vector<1x8xf32>
    %12 = vector.broadcast %11 : vector<1x8xf32> to vector<16x8xf32>
    %13 = arith.addf %10, %12 : vector<16x8xf32>
    %c0_10 = arith.constant 0 : index
    %c0_11 = arith.constant 0 : index
    %c0_12 = arith.constant 0 : index
    %14 = vector.load %arg2[%c0_10, %c0_11, %c0_12] : memref<1x16x16xbf16, #tpu.memory_space<vmem>>, vector<1x16x16xbf16>
    %15 = vector.shape_cast %14 : vector<1x16x16xbf16> to vector<16x16xbf16>
    %16 = tpu.iota {dimensions = array<i32: 0>} : vector<16x16xi32>
    %17 = tpu.iota {dimensions = array<i32: 1>} : vector<16x16xi32>
    %18 = arith.cmpi eq, %16, %17 : vector<16x16xi32>
    %cst = arith.constant 1.000000e+00 : f32
    %19 = arith.truncf %cst : f32 to bf16
    %20 = vector.broadcast %19 : bf16 to vector<16x16xbf16>
    %21 = arith.select %18, %20, %15 : vector<16x16xi1>, vector<16x16xbf16>
    %22 = arith.extf %21 : vector<16x16xbf16> to vector<16x16xf32>
    %cst_13 = arith.constant dense<0.000000e+00> : vector<16xf32>
    %23 = vector.multi_reduction <add>, %22, %cst_13 [1] : vector<16x16xf32> to vector<16xf32>
    %24 = vector.shape_cast %23 : vector<16xf32> to vector<16x1xf32>
    %cst_14 = arith.constant 1.000000e+00 : f32
    %25 = vector.broadcast %cst_14 : f32 to vector<16x1xf32>
    %26 = arith.maximumf %24, %25 : vector<16x1xf32>
    %27 = math.rsqrt %26 : vector<16x1xf32>
    %28 = arith.truncf %13 : vector<16x8xf32> to vector<16x8xbf16>
    %c0_15 = arith.constant 0 : index
    %c0_16 = arith.constant 0 : index
    %29 = vector.load %arg7[%c0_15, %c0_16] : memref<8x128xbf16, #tpu.memory_space<vmem>>, vector<8x128xbf16>
    %cst_17 = arith.constant dense<0.000000e+00> : vector<16x128xf32>
    %30 = tpu.matmul %28, %29, %cst_17 {dimension_numbers = #tpu.dot_dimension_numbers<[1], [0], [0], [1], [0, 0, 1, 1], [], []>} : vector<16x8xbf16>, vector<8x128xbf16>, vector<16x128xf32> -> vector<16x128xf32>
    %31 = vector.broadcast %27 : vector<16x1xf32> to vector<16x128xf32>
    %32 = arith.mulf %30, %31 : vector<16x128xf32>
    %33 = arith.truncf %32 : vector<16x128xf32> to vector<16x128xbf16>
    %cst_18 = arith.constant dense<0.000000e+00> : vector<16x128xf32>
    %34 = tpu.matmul %21, %33, %cst_18 {dimension_numbers = #tpu.dot_dimension_numbers<[1], [0], [0], [1], [0, 0, 1, 1], [], []>} : vector<16x16xbf16>, vector<16x128xbf16>, vector<16x128xf32> -> vector<16x128xf32>
    %35 = vector.broadcast %27 : vector<16x1xf32> to vector<16x128xf32>
    %36 = arith.mulf %34, %35 : vector<16x128xf32>
    %c0_19 = arith.constant 0 : index
    %c0_20 = arith.constant 0 : index
    %37 = vector.load %arg8[%c0_19, %c0_20] : memref<1x128xf32, #tpu.memory_space<vmem>>, vector<1x128xf32>
    %38 = vector.broadcast %37 : vector<1x128xf32> to vector<16x128xf32>
    %39 = arith.addf %36, %38 : vector<16x128xf32>
    %cst_21 = arith.constant 0.000000e+00 : f32
    %40 = vector.broadcast %cst_21 : f32 to vector<16x128xf32>
    %41 = arith.maximumf %39, %40 : vector<16x128xf32>
    %cst_22 = arith.constant dense<0.000000e+00> : vector<128xf32>
    %42 = vector.multi_reduction <add>, %41, %cst_22 [0] : vector<16x128xf32> to vector<128xf32>
    %43 = vector.shape_cast %42 : vector<128xf32> to vector<1x128xf32>
    %cst_23 = arith.constant 1.600000e+01 : f32
    %44 = vector.broadcast %cst_23 : f32 to vector<1x128xf32>
    %45 = arith.divf %43, %44 : vector<1x128xf32>
    %46 = vector.broadcast %45 : vector<1x128xf32> to vector<16x128xf32>
    %47 = arith.subf %41, %46 : vector<16x128xf32>
    %c0_24 = arith.constant 0 : index
    %c0_25 = arith.constant 0 : index
    %c0_26 = arith.constant 0 : index
    %48 = vector.load %arg10[%c0_24, %c0_25, %c0_26] : memref<1x1x128xf32, #tpu.memory_space<vmem>>, vector<1x1x128xf32>
    %49 = vector.shape_cast %48 : vector<1x1x128xf32> to vector<1x128xf32>
    %50 = vector.shape_cast %45 : vector<1x128xf32> to vector<1x1x128xf32>
    tpu.vector_store %arg10[%c0_24, %c0_25, %c0_26], %50 {strides = array<i32>} : memref<1x1x128xf32, #tpu.memory_space<vmem>>, vector<1x1x128xf32>,
    %51 = arith.mulf %47, %47 : vector<16x128xf32>
    %cst_27 = arith.constant dense<0.000000e+00> : vector<128xf32>
    %52 = vector.multi_reduction <add>, %51, %cst_27 [0] : vector<16x128xf32> to vector<128xf32>
    %53 = vector.shape_cast %52 : vector<128xf32> to vector<1x128xf32>
    %c0_28 = arith.constant 0 : index
    %c0_29 = arith.constant 0 : index
    %c0_30 = arith.constant 0 : index
    %54 = vector.load %arg11[%c0_28, %c0_29, %c0_30] : memref<1x1x128xf32, #tpu.memory_space<vmem>>, vector<1x1x128xf32>
    %55 = vector.shape_cast %54 : vector<1x1x128xf32> to vector<1x128xf32>
    %56 = vector.shape_cast %53 : vector<1x128xf32> to vector<1x1x128xf32>
    tpu.vector_store %arg11[%c0_28, %c0_29, %c0_30], %56 {strides = array<i32>} : memref<1x1x128xf32, #tpu.memory_space<vmem>>, vector<1x1x128xf32>,
    %57 = arith.truncf %41 : vector<16x128xf32> to vector<16x128xbf16>
    %c0_31 = arith.constant 0 : index
    %c0_32 = arith.constant 0 : index
    %c0_33 = arith.constant 0 : index
    %58 = vector.load %arg9[%c0_31, %c0_32, %c0_33] : memref<1x16x128xbf16, #tpu.memory_space<vmem>>, vector<1x16x128xbf16>
    %59 = vector.shape_cast %58 : vector<1x16x128xbf16> to vector<16x128xbf16>
    %60 = vector.shape_cast %57 : vector<16x128xbf16> to vector<1x16x128xbf16>
    tpu.vector_store %arg9[%c0_31, %c0_32, %c0_33], %60 {strides = array<i32>} : memref<1x16x128xbf16, #tpu.memory_space<vmem>>, vector<1x16x128xbf16>,
    return
  }
  func.func @transform_0(%arg0: i32) -> (i32, i32, i32) {
    %c0_i32 = arith.constant 0 : i32
    %c0_i32_0 = arith.constant 0 : i32
    %c0_i32_1 = arith.constant 0 : i32
    return %arg0, %c0_i32, %c0_i32_0 : i32, i32, i32
  }
  func.func @transform_1(%arg0: i32) -> (i32, i32, i32) {
    %c0_i32 = arith.constant 0 : i32
    %c0_i32_0 = arith.constant 0 : i32
    %c0_i32_1 = arith.constant 0 : i32
    return %arg0, %c0_i32, %c0_i32_0 : i32, i32, i32
  }
  func.func @transform_2(%arg0: i32) -> (i32, i32) {
    %c0_i32 = arith.constant 0 : i32
    %c0_i32_0 = arith.constant 0 : i32
    %c0_i32_1 = arith.constant 0 : i32
    return %c0_i32, %c0_i32_0 : i32, i32
  }
  func.func @transform_3(%arg0: i32) -> (i32, i32) {
    %c0_i32 = arith.constant 0 : i32
    %c0_i32_0 = arith.constant 0 : i32
    %c0_i32_1 = arith.constant 0 : i32
    return %c0_i32, %c0_i32_0 : i32, i32
  }
  func.func @transform_4(%arg0: i32) -> (i32, i32) {
    %c0_i32 = arith.constant 0 : i32
    %c0_i32_0 = arith.constant 0 : i32
    %c0_i32_1 = arith.constant 0 : i32
    return %c0_i32, %c0_i32_0 : i32, i32
  }
  func.func @transform_5(%arg0: i32) -> (i32, i32) {
    %c0_i32 = arith.constant 0 : i32
    %c0_i32_0 = arith.constant 0 : i32
    %c0_i32_1 = arith.constant 0 : i32
    return %c0_i32, %c0_i32_0 : i32, i32
  }
  func.func @transform_6(%arg0: i32) -> (i32, i32) {
    %c0_i32 = arith.constant 0 : i32
    %c0_i32_0 = arith.constant 0 : i32
    %c0_i32_1 = arith.constant 0 : i32
    return %c0_i32, %c0_i32_0 : i32, i32
  }
  func.func @transform_7(%arg0: i32) -> (i32, i32) {
    %c0_i32 = arith.constant 0 : i32
    %c0_i32_0 = arith.constant 0 : i32
    %c0_i32_1 = arith.constant 0 : i32
    return %c0_i32, %c0_i32_0 : i32, i32
  }
  func.func @transform_8(%arg0: i32) -> (i32, i32, i32) {
    %c0_i32 = arith.constant 0 : i32
    %c0_i32_0 = arith.constant 0 : i32
    %c0_i32_1 = arith.constant 0 : i32
    return %arg0, %c0_i32, %c0_i32_0 : i32, i32, i32
  }
  func.func @transform_9(%arg0: i32) -> (i32, i32, i32) {
    %c0_i32 = arith.constant 0 : i32
    %c0_i32_0 = arith.constant 0 : i32
    %c0_i32_1 = arith.constant 0 : i32
    return %arg0, %c0_i32, %c0_i32_0 : i32, i32, i32
  }
  func.func @transform_10(%arg0: i32) -> (i32, i32, i32) {
    %c0_i32 = arith.constant 0 : i32
    %c0_i32_0 = arith.constant 0 : i32
    %c0_i32_1 = arith.constant 0 : i32
    return %arg0, %c0_i32, %c0_i32_0 : i32, i32, i32
  }
}

module attributes {stable_mosaic.version = 11 : i64} {
  func.func @_gcn_layer_kernel(%arg0: i32, %arg1: memref<1x16x128xbf16, #tpu.memory_space<vmem>>, %arg2: memref<1x16x16xbf16, #tpu.memory_space<vmem>>, %arg3: memref<1x128xf32, #tpu.memory_space<vmem>>, %arg4: memref<1x128xf32, #tpu.memory_space<vmem>>, %arg5: memref<1x128xf32, #tpu.memory_space<vmem>>, %arg6: memref<1x128xf32, #tpu.memory_space<vmem>>, %arg7: memref<128x128xbf16, #tpu.memory_space<vmem>>, %arg8: memref<1x128xf32, #tpu.memory_space<vmem>>, %arg9: memref<1x16x128xbf16, #tpu.memory_space<vmem>>, %arg10: memref<1x1x128xf32, #tpu.memory_space<vmem>>, %arg11: memref<1x1x128xf32, #tpu.memory_space<vmem>>) attributes {dimension_semantics = [#tpu.dimension_semantics<parallel>], iteration_bounds = array<i64: 2>, scalar_prefetch = 0 : i64, scratch_operands = 0 : i64, tpu.core_type = #tpu.core_type<tc>, window_params = [{transform_indices = @transform_0, window_bounds = array<i64: 1, 16, 128>}, {transform_indices = @transform_1, window_bounds = array<i64: 1, 16, 16>}, {pipeline_mode = #tpu.pipeline_mode<synchronous>, transform_indices = @transform_2, window_bounds = array<i64: 1, 128>}, {pipeline_mode = #tpu.pipeline_mode<synchronous>, transform_indices = @transform_3, window_bounds = array<i64: 1, 128>}, {pipeline_mode = #tpu.pipeline_mode<synchronous>, transform_indices = @transform_4, window_bounds = array<i64: 1, 128>}, {pipeline_mode = #tpu.pipeline_mode<synchronous>, transform_indices = @transform_5, window_bounds = array<i64: 1, 128>}, {pipeline_mode = #tpu.pipeline_mode<synchronous>, transform_indices = @transform_6, window_bounds = array<i64: 128, 128>}, {pipeline_mode = #tpu.pipeline_mode<synchronous>, transform_indices = @transform_7, window_bounds = array<i64: 1, 128>}, {transform_indices = @transform_8, window_bounds = array<i64: 1, 16, 128>}, {transform_indices = @transform_9, window_bounds = array<i64: 1, 1, 128>}, {transform_indices = @transform_10, window_bounds = array<i64: 1, 1, 128>}]} {
    %c0 = arith.constant 0 : index
    %c0_0 = arith.constant 0 : index
    %c0_1 = arith.constant 0 : index
    %0 = vector.load %arg1[%c0, %c0_0, %c0_1] : memref<1x16x128xbf16, #tpu.memory_space<vmem>>, vector<1x16x128xbf16>
    %1 = vector.shape_cast %0 : vector<1x16x128xbf16> to vector<16x128xbf16>
    %2 = arith.extf %1 : vector<16x128xbf16> to vector<16x128xf32>
    %c0_2 = arith.constant 0 : index
    %c0_3 = arith.constant 0 : index
    %3 = vector.load %arg3[%c0_2, %c0_3] : memref<1x128xf32, #tpu.memory_space<vmem>>, vector<1x128xf32>
    %4 = vector.broadcast %3 : vector<1x128xf32> to vector<16x128xf32>
    %5 = arith.subf %2, %4 : vector<16x128xf32>
    %c0_4 = arith.constant 0 : index
    %c0_5 = arith.constant 0 : index
    %6 = vector.load %arg4[%c0_4, %c0_5] : memref<1x128xf32, #tpu.memory_space<vmem>>, vector<1x128xf32>
    %7 = vector.broadcast %6 : vector<1x128xf32> to vector<16x128xf32>
    %8 = arith.mulf %5, %7 : vector<16x128xf32>
    %c0_6 = arith.constant 0 : index
    %c0_7 = arith.constant 0 : index
    %9 = vector.load %arg5[%c0_6, %c0_7] : memref<1x128xf32, #tpu.memory_space<vmem>>, vector<1x128xf32>
    %10 = vector.broadcast %9 : vector<1x128xf32> to vector<16x128xf32>
    %11 = arith.mulf %8, %10 : vector<16x128xf32>
    %c0_8 = arith.constant 0 : index
    %c0_9 = arith.constant 0 : index
    %12 = vector.load %arg6[%c0_8, %c0_9] : memref<1x128xf32, #tpu.memory_space<vmem>>, vector<1x128xf32>
    %13 = vector.broadcast %12 : vector<1x128xf32> to vector<16x128xf32>
    %14 = arith.addf %11, %13 : vector<16x128xf32>
    %c0_10 = arith.constant 0 : index
    %c0_11 = arith.constant 0 : index
    %c0_12 = arith.constant 0 : index
    %15 = vector.load %arg2[%c0_10, %c0_11, %c0_12] : memref<1x16x16xbf16, #tpu.memory_space<vmem>>, vector<1x16x16xbf16>
    %16 = vector.shape_cast %15 : vector<1x16x16xbf16> to vector<16x16xbf16>
    %17 = tpu.iota {dimensions = array<i32: 0>} : vector<16x16xi32>
    %18 = tpu.iota {dimensions = array<i32: 1>} : vector<16x16xi32>
    %19 = arith.cmpi eq, %17, %18 : vector<16x16xi32>
    %cst = arith.constant 1.000000e+00 : f32
    %20 = arith.truncf %cst : f32 to bf16
    %21 = vector.broadcast %20 : bf16 to vector<16x16xbf16>
    %22 = arith.select %19, %21, %16 : vector<16x16xi1>, vector<16x16xbf16>
    %23 = arith.extf %22 : vector<16x16xbf16> to vector<16x16xf32>
    %cst_13 = arith.constant dense<0.000000e+00> : vector<16xf32>
    %24 = vector.multi_reduction <add>, %23, %cst_13 [1] : vector<16x16xf32> to vector<16xf32>
    %25 = vector.shape_cast %24 : vector<16xf32> to vector<16x1xf32>
    %cst_14 = arith.constant 1.000000e+00 : f32
    %26 = vector.broadcast %cst_14 : f32 to vector<16x1xf32>
    %27 = arith.maximumf %25, %26 : vector<16x1xf32>
    %28 = math.rsqrt %27 : vector<16x1xf32>
    %29 = arith.truncf %14 : vector<16x128xf32> to vector<16x128xbf16>
    %c0_15 = arith.constant 0 : index
    %c0_16 = arith.constant 0 : index
    %30 = vector.load %arg7[%c0_15, %c0_16] : memref<128x128xbf16, #tpu.memory_space<vmem>>, vector<128x128xbf16>
    %cst_17 = arith.constant dense<0.000000e+00> : vector<16x128xf32>
    %31 = tpu.matmul %29, %30, %cst_17 {dimension_numbers = #tpu.dot_dimension_numbers<[1], [0], [0], [1], [0, 0, 1, 1], [], []>} : vector<16x128xbf16>, vector<128x128xbf16>, vector<16x128xf32> -> vector<16x128xf32>
    %32 = vector.broadcast %28 : vector<16x1xf32> to vector<16x128xf32>
    %33 = arith.mulf %31, %32 : vector<16x128xf32>
    %34 = arith.truncf %33 : vector<16x128xf32> to vector<16x128xbf16>
    %cst_18 = arith.constant dense<0.000000e+00> : vector<16x128xf32>
    %35 = tpu.matmul %22, %34, %cst_18 {dimension_numbers = #tpu.dot_dimension_numbers<[1], [0], [0], [1], [0, 0, 1, 1], [], []>} : vector<16x16xbf16>, vector<16x128xbf16>, vector<16x128xf32> -> vector<16x128xf32>
    %36 = vector.broadcast %28 : vector<16x1xf32> to vector<16x128xf32>
    %37 = arith.mulf %35, %36 : vector<16x128xf32>
    %c0_19 = arith.constant 0 : index
    %c0_20 = arith.constant 0 : index
    %38 = vector.load %arg8[%c0_19, %c0_20] : memref<1x128xf32, #tpu.memory_space<vmem>>, vector<1x128xf32>
    %39 = vector.broadcast %38 : vector<1x128xf32> to vector<16x128xf32>
    %40 = arith.addf %37, %39 : vector<16x128xf32>
    %cst_21 = arith.constant 0.000000e+00 : f32
    %41 = vector.broadcast %cst_21 : f32 to vector<16x128xf32>
    %42 = arith.maximumf %40, %41 : vector<16x128xf32>
    %cst_22 = arith.constant dense<0.000000e+00> : vector<128xf32>
    %43 = vector.multi_reduction <add>, %42, %cst_22 [0] : vector<16x128xf32> to vector<128xf32>
    %44 = vector.shape_cast %43 : vector<128xf32> to vector<1x128xf32>
    %cst_23 = arith.constant 1.600000e+01 : f32
    %45 = vector.broadcast %cst_23 : f32 to vector<1x128xf32>
    %46 = arith.divf %44, %45 : vector<1x128xf32>
    %47 = vector.broadcast %46 : vector<1x128xf32> to vector<16x128xf32>
    %48 = arith.subf %42, %47 : vector<16x128xf32>
    %c0_24 = arith.constant 0 : index
    %c0_25 = arith.constant 0 : index
    %c0_26 = arith.constant 0 : index
    %49 = vector.load %arg10[%c0_24, %c0_25, %c0_26] : memref<1x1x128xf32, #tpu.memory_space<vmem>>, vector<1x1x128xf32>
    %50 = vector.shape_cast %49 : vector<1x1x128xf32> to vector<1x128xf32>
    %51 = vector.shape_cast %46 : vector<1x128xf32> to vector<1x1x128xf32>
    tpu.vector_store %arg10[%c0_24, %c0_25, %c0_26], %51 {strides = array<i32>} : memref<1x1x128xf32, #tpu.memory_space<vmem>>, vector<1x1x128xf32>,
    %52 = arith.mulf %48, %48 : vector<16x128xf32>
    %cst_27 = arith.constant dense<0.000000e+00> : vector<128xf32>
    %53 = vector.multi_reduction <add>, %52, %cst_27 [0] : vector<16x128xf32> to vector<128xf32>
    %54 = vector.shape_cast %53 : vector<128xf32> to vector<1x128xf32>
    %c0_28 = arith.constant 0 : index
    %c0_29 = arith.constant 0 : index
    %c0_30 = arith.constant 0 : index
    %55 = vector.load %arg11[%c0_28, %c0_29, %c0_30] : memref<1x1x128xf32, #tpu.memory_space<vmem>>, vector<1x1x128xf32>
    %56 = vector.shape_cast %55 : vector<1x1x128xf32> to vector<1x128xf32>
    %57 = vector.shape_cast %54 : vector<1x128xf32> to vector<1x1x128xf32>
    tpu.vector_store %arg11[%c0_28, %c0_29, %c0_30], %57 {strides = array<i32>} : memref<1x1x128xf32, #tpu.memory_space<vmem>>, vector<1x1x128xf32>,
    %58 = arith.truncf %42 : vector<16x128xf32> to vector<16x128xbf16>
    %c0_31 = arith.constant 0 : index
    %c0_32 = arith.constant 0 : index
    %c0_33 = arith.constant 0 : index
    %59 = vector.load %arg9[%c0_31, %c0_32, %c0_33] : memref<1x16x128xbf16, #tpu.memory_space<vmem>>, vector<1x16x128xbf16>
    %60 = vector.shape_cast %59 : vector<1x16x128xbf16> to vector<16x128xbf16>
    %61 = vector.shape_cast %58 : vector<16x128xbf16> to vector<1x16x128xbf16>
    tpu.vector_store %arg9[%c0_31, %c0_32, %c0_33], %61 {strides = array<i32>} : memref<1x16x128xbf16, #tpu.memory_space<vmem>>, vector<1x16x128xbf16>,
    return
  }
  func.func @transform_0(%arg0: i32) -> (i32, i32, i32) {
    %c0_i32 = arith.constant 0 : i32
    %c0_i32_0 = arith.constant 0 : i32
    %c0_i32_1 = arith.constant 0 : i32
    return %arg0, %c0_i32, %c0_i32_0 : i32, i32, i32
  }
  func.func @transform_1(%arg0: i32) -> (i32, i32, i32) {
    %c0_i32 = arith.constant 0 : i32
    %c0_i32_0 = arith.constant 0 : i32
    %c0_i32_1 = arith.constant 0 : i32
    return %arg0, %c0_i32, %c0_i32_0 : i32, i32, i32
  }
  func.func @transform_2(%arg0: i32) -> (i32, i32) {
    %c0_i32 = arith.constant 0 : i32
    %c0_i32_0 = arith.constant 0 : i32
    %c0_i32_1 = arith.constant 0 : i32
    return %c0_i32, %c0_i32_0 : i32, i32
  }
  func.func @transform_3(%arg0: i32) -> (i32, i32) {
    %c0_i32 = arith.constant 0 : i32
    %c0_i32_0 = arith.constant 0 : i32
    %c0_i32_1 = arith.constant 0 : i32
    return %c0_i32, %c0_i32_0 : i32, i32
  }
  func.func @transform_4(%arg0: i32) -> (i32, i32) {
    %c0_i32 = arith.constant 0 : i32
    %c0_i32_0 = arith.constant 0 : i32
    %c0_i32_1 = arith.constant 0 : i32
    return %c0_i32, %c0_i32_0 : i32, i32
  }
  func.func @transform_5(%arg0: i32) -> (i32, i32) {
    %c0_i32 = arith.constant 0 : i32
    %c0_i32_0 = arith.constant 0 : i32
    %c0_i32_1 = arith.constant 0 : i32
    return %c0_i32, %c0_i32_0 : i32, i32
  }
  func.func @transform_6(%arg0: i32) -> (i32, i32) {
    %c0_i32 = arith.constant 0 : i32
    %c0_i32_0 = arith.constant 0 : i32
    %c0_i32_1 = arith.constant 0 : i32
    return %c0_i32, %c0_i32_0 : i32, i32
  }
  func.func @transform_7(%arg0: i32) -> (i32, i32) {
    %c0_i32 = arith.constant 0 : i32
    %c0_i32_0 = arith.constant 0 : i32
    %c0_i32_1 = arith.constant 0 : i32
    return %c0_i32, %c0_i32_0 : i32, i32
  }
  func.func @transform_8(%arg0: i32) -> (i32, i32, i32) {
    %c0_i32 = arith.constant 0 : i32
    %c0_i32_0 = arith.constant 0 : i32
    %c0_i32_1 = arith.constant 0 : i32
    return %arg0, %c0_i32, %c0_i32_0 : i32, i32, i32
  }
  func.func @transform_9(%arg0: i32) -> (i32, i32, i32) {
    %c0_i32 = arith.constant 0 : i32
    %c0_i32_0 = arith.constant 0 : i32
    %c0_i32_1 = arith.constant 0 : i32
    return %arg0, %c0_i32, %c0_i32_0 : i32, i32, i32
  }
  func.func @transform_10(%arg0: i32) -> (i32, i32, i32) {
    %c0_i32 = arith.constant 0 : i32
    %c0_i32_0 = arith.constant 0 : i32
    %c0_i32_1 = arith.constant 0 : i32
    return %arg0, %c0_i32, %c0_i32_0 : i32, i32, i32
  }
}

module attributes {stable_mosaic.version = 11 : i64} {
  func.func @_head_kernel(%arg0: i32, %arg1: memref<1x16x128xbf16, #tpu.memory_space<vmem>>, %arg2: memref<1x16x128xbf16, #tpu.memory_space<vmem>>, %arg3: memref<1x16x128xbf16, #tpu.memory_space<vmem>>, %arg4: memref<1x128xf32, #tpu.memory_space<vmem>>, %arg5: memref<1x128xf32, #tpu.memory_space<vmem>>, %arg6: memref<1x128xf32, #tpu.memory_space<vmem>>, %arg7: memref<1x128xf32, #tpu.memory_space<vmem>>, %arg8: memref<1x128xf32, #tpu.memory_space<vmem>>, %arg9: memref<1x128xf32, #tpu.memory_space<vmem>>, %arg10: memref<1x128xf32, #tpu.memory_space<vmem>>, %arg11: memref<1x128xf32, #tpu.memory_space<vmem>>, %arg12: memref<1x128xf32, #tpu.memory_space<vmem>>, %arg13: memref<1x128xf32, #tpu.memory_space<vmem>>, %arg14: memref<1x128xf32, #tpu.memory_space<vmem>>, %arg15: memref<1x128xf32, #tpu.memory_space<vmem>>, %arg16: memref<384x128xbf16, #tpu.memory_space<vmem>>, %arg17: memref<1x128xf32, #tpu.memory_space<vmem>>, %arg18: memref<1x16x128xf32, #tpu.memory_space<vmem>>) attributes {dimension_semantics = [#tpu.dimension_semantics<parallel>], iteration_bounds = array<i64: 2>, scalar_prefetch = 0 : i64, scratch_operands = 0 : i64, tpu.core_type = #tpu.core_type<tc>, window_params = [{transform_indices = @transform_0, window_bounds = array<i64: 1, 16, 128>}, {transform_indices = @transform_1, window_bounds = array<i64: 1, 16, 128>}, {transform_indices = @transform_2, window_bounds = array<i64: 1, 16, 128>}, {pipeline_mode = #tpu.pipeline_mode<synchronous>, transform_indices = @transform_3, window_bounds = array<i64: 1, 128>}, {pipeline_mode = #tpu.pipeline_mode<synchronous>, transform_indices = @transform_4, window_bounds = array<i64: 1, 128>}, {pipeline_mode = #tpu.pipeline_mode<synchronous>, transform_indices = @transform_5, window_bounds = array<i64: 1, 128>}, {pipeline_mode = #tpu.pipeline_mode<synchronous>, transform_indices = @transform_6, window_bounds = array<i64: 1, 128>}, {pipeline_mode = #tpu.pipeline_mode<synchronous>, transform_indices = @transform_7, window_bounds = array<i64: 1, 128>}, {pipeline_mode = #tpu.pipeline_mode<synchronous>, transform_indices = @transform_8, window_bounds = array<i64: 1, 128>}, {pipeline_mode = #tpu.pipeline_mode<synchronous>, transform_indices = @transform_9, window_bounds = array<i64: 1, 128>}, {pipeline_mode = #tpu.pipeline_mode<synchronous>, transform_indices = @transform_10, window_bounds = array<i64: 1, 128>}, {pipeline_mode = #tpu.pipeline_mode<synchronous>, transform_indices = @transform_11, window_bounds = array<i64: 1, 128>}, {pipeline_mode = #tpu.pipeline_mode<synchronous>, transform_indices = @transform_12, window_bounds = array<i64: 1, 128>}, {pipeline_mode = #tpu.pipeline_mode<synchronous>, transform_indices = @transform_13, window_bounds = array<i64: 1, 128>}, {pipeline_mode = #tpu.pipeline_mode<synchronous>, transform_indices = @transform_14, window_bounds = array<i64: 1, 128>}, {pipeline_mode = #tpu.pipeline_mode<synchronous>, transform_indices = @transform_15, window_bounds = array<i64: 384, 128>}, {pipeline_mode = #tpu.pipeline_mode<synchronous>, transform_indices = @transform_16, window_bounds = array<i64: 1, 128>}, {transform_indices = @transform_17, window_bounds = array<i64: 1, 16, 128>}]} {
    %c0 = arith.constant 0 : index
    %c0_0 = arith.constant 0 : index
    %c0_1 = arith.constant 0 : index
    %0 = vector.load %arg1[%c0, %c0_0, %c0_1] : memref<1x16x128xbf16, #tpu.memory_space<vmem>>, vector<1x16x128xbf16>
    %1 = vector.shape_cast %0 : vector<1x16x128xbf16> to vector<16x128xbf16>
    %2 = arith.extf %1 : vector<16x128xbf16> to vector<16x128xf32>
    %c0_2 = arith.constant 0 : index
    %c0_3 = arith.constant 0 : index
    %3 = vector.load %arg4[%c0_2, %c0_3] : memref<1x128xf32, #tpu.memory_space<vmem>>, vector<1x128xf32>
    %4 = vector.broadcast %3 : vector<1x128xf32> to vector<16x128xf32>
    %5 = arith.subf %2, %4 : vector<16x128xf32>
    %c0_4 = arith.constant 0 : index
    %c0_5 = arith.constant 0 : index
    %6 = vector.load %arg5[%c0_4, %c0_5] : memref<1x128xf32, #tpu.memory_space<vmem>>, vector<1x128xf32>
    %7 = vector.broadcast %6 : vector<1x128xf32> to vector<16x128xf32>
    %8 = arith.mulf %5, %7 : vector<16x128xf32>
    %c0_6 = arith.constant 0 : index
    %c0_7 = arith.constant 0 : index
    %9 = vector.load %arg6[%c0_6, %c0_7] : memref<1x128xf32, #tpu.memory_space<vmem>>, vector<1x128xf32>
    %10 = vector.broadcast %9 : vector<1x128xf32> to vector<16x128xf32>
    %11 = arith.mulf %8, %10 : vector<16x128xf32>
    %c0_8 = arith.constant 0 : index
    %c0_9 = arith.constant 0 : index
    %12 = vector.load %arg7[%c0_8, %c0_9] : memref<1x128xf32, #tpu.memory_space<vmem>>, vector<1x128xf32>
    %13 = vector.broadcast %12 : vector<1x128xf32> to vector<16x128xf32>
    %14 = arith.addf %11, %13 : vector<16x128xf32>
    %15 = arith.truncf %14 : vector<16x128xf32> to vector<16x128xbf16>
    %c0_10 = arith.constant 0 : index
    %c0_11 = arith.constant 0 : index
    %c0_12 = arith.constant 0 : index
    %16 = vector.load %arg2[%c0_10, %c0_11, %c0_12] : memref<1x16x128xbf16, #tpu.memory_space<vmem>>, vector<1x16x128xbf16>
    %17 = vector.shape_cast %16 : vector<1x16x128xbf16> to vector<16x128xbf16>
    %18 = arith.extf %17 : vector<16x128xbf16> to vector<16x128xf32>
    %c0_13 = arith.constant 0 : index
    %c0_14 = arith.constant 0 : index
    %19 = vector.load %arg8[%c0_13, %c0_14] : memref<1x128xf32, #tpu.memory_space<vmem>>, vector<1x128xf32>
    %20 = vector.broadcast %19 : vector<1x128xf32> to vector<16x128xf32>
    %21 = arith.subf %18, %20 : vector<16x128xf32>
    %c0_15 = arith.constant 0 : index
    %c0_16 = arith.constant 0 : index
    %22 = vector.load %arg9[%c0_15, %c0_16] : memref<1x128xf32, #tpu.memory_space<vmem>>, vector<1x128xf32>
    %23 = vector.broadcast %22 : vector<1x128xf32> to vector<16x128xf32>
    %24 = arith.mulf %21, %23 : vector<16x128xf32>
    %c0_17 = arith.constant 0 : index
    %c0_18 = arith.constant 0 : index
    %25 = vector.load %arg10[%c0_17, %c0_18] : memref<1x128xf32, #tpu.memory_space<vmem>>, vector<1x128xf32>
    %26 = vector.broadcast %25 : vector<1x128xf32> to vector<16x128xf32>
    %27 = arith.mulf %24, %26 : vector<16x128xf32>
    %c0_19 = arith.constant 0 : index
    %c0_20 = arith.constant 0 : index
    %28 = vector.load %arg11[%c0_19, %c0_20] : memref<1x128xf32, #tpu.memory_space<vmem>>, vector<1x128xf32>
    %29 = vector.broadcast %28 : vector<1x128xf32> to vector<16x128xf32>
    %30 = arith.addf %27, %29 : vector<16x128xf32>
    %31 = arith.truncf %30 : vector<16x128xf32> to vector<16x128xbf16>
    %c0_21 = arith.constant 0 : index
    %c0_22 = arith.constant 0 : index
    %c0_23 = arith.constant 0 : index
    %32 = vector.load %arg3[%c0_21, %c0_22, %c0_23] : memref<1x16x128xbf16, #tpu.memory_space<vmem>>, vector<1x16x128xbf16>
    %33 = vector.shape_cast %32 : vector<1x16x128xbf16> to vector<16x128xbf16>
    %34 = arith.extf %33 : vector<16x128xbf16> to vector<16x128xf32>
    %c0_24 = arith.constant 0 : index
    %c0_25 = arith.constant 0 : index
    %35 = vector.load %arg12[%c0_24, %c0_25] : memref<1x128xf32, #tpu.memory_space<vmem>>, vector<1x128xf32>
    %36 = vector.broadcast %35 : vector<1x128xf32> to vector<16x128xf32>
    %37 = arith.subf %34, %36 : vector<16x128xf32>
    %c0_26 = arith.constant 0 : index
    %c0_27 = arith.constant 0 : index
    %38 = vector.load %arg13[%c0_26, %c0_27] : memref<1x128xf32, #tpu.memory_space<vmem>>, vector<1x128xf32>
    %39 = vector.broadcast %38 : vector<1x128xf32> to vector<16x128xf32>
    %40 = arith.mulf %37, %39 : vector<16x128xf32>
    %c0_28 = arith.constant 0 : index
    %c0_29 = arith.constant 0 : index
    %41 = vector.load %arg14[%c0_28, %c0_29] : memref<1x128xf32, #tpu.memory_space<vmem>>, vector<1x128xf32>
    %42 = vector.broadcast %41 : vector<1x128xf32> to vector<16x128xf32>
    %43 = arith.mulf %40, %42 : vector<16x128xf32>
    %c0_30 = arith.constant 0 : index
    %c0_31 = arith.constant 0 : index
    %44 = vector.load %arg15[%c0_30, %c0_31] : memref<1x128xf32, #tpu.memory_space<vmem>>, vector<1x128xf32>
    %45 = vector.broadcast %44 : vector<1x128xf32> to vector<16x128xf32>
    %46 = arith.addf %43, %45 : vector<16x128xf32>
    %47 = arith.truncf %46 : vector<16x128xf32> to vector<16x128xbf16>
    %48 = tpu.concatenate %15, %31, %47 in 1 : vector<16x128xbf16>, vector<16x128xbf16>, vector<16x128xbf16> -> vector<16x384xbf16>
    %c0_32 = arith.constant 0 : index
    %c0_33 = arith.constant 0 : index
    %49 = vector.load %arg16[%c0_32, %c0_33] : memref<384x128xbf16, #tpu.memory_space<vmem>>, vector<384x128xbf16>
    %cst = arith.constant dense<0.000000e+00> : vector<16x128xf32>
    %50 = tpu.matmul %48, %49, %cst {dimension_numbers = #tpu.dot_dimension_numbers<[1], [0], [0], [1], [0, 0, 1, 1], [], []>} : vector<16x384xbf16>, vector<384x128xbf16>, vector<16x128xf32> -> vector<16x128xf32>
    %c0_34 = arith.constant 0 : index
    %c0_35 = arith.constant 0 : index
    %51 = vector.load %arg17[%c0_34, %c0_35] : memref<1x128xf32, #tpu.memory_space<vmem>>, vector<1x128xf32>
    %52 = vector.broadcast %51 : vector<1x128xf32> to vector<16x128xf32>
    %53 = arith.addf %50, %52 : vector<16x128xf32>
    %cst_36 = arith.constant 0.000000e+00 : f32
    %54 = vector.broadcast %cst_36 : f32 to vector<16x128xf32>
    %55 = arith.maximumf %53, %54 : vector<16x128xf32>
    %c0_37 = arith.constant 0 : index
    %c0_38 = arith.constant 0 : index
    %c0_39 = arith.constant 0 : index
    %56 = vector.load %arg18[%c0_37, %c0_38, %c0_39] : memref<1x16x128xf32, #tpu.memory_space<vmem>>, vector<1x16x128xf32>
    %57 = vector.shape_cast %56 : vector<1x16x128xf32> to vector<16x128xf32>
    %58 = vector.shape_cast %55 : vector<16x128xf32> to vector<1x16x128xf32>
    tpu.vector_store %arg18[%c0_37, %c0_38, %c0_39], %58 {strides = array<i32>} : memref<1x16x128xf32, #tpu.memory_space<vmem>>, vector<1x16x128xf32>,
    return
  }
  func.func @transform_0(%arg0: i32) -> (i32, i32, i32) {
    %c0_i32 = arith.constant 0 : i32
    %c0_i32_0 = arith.constant 0 : i32
    %c0_i32_1 = arith.constant 0 : i32
    return %arg0, %c0_i32, %c0_i32_0 : i32, i32, i32
  }
  func.func @transform_1(%arg0: i32) -> (i32, i32, i32) {
    %c0_i32 = arith.constant 0 : i32
    %c0_i32_0 = arith.constant 0 : i32
    %c0_i32_1 = arith.constant 0 : i32
    return %arg0, %c0_i32, %c0_i32_0 : i32, i32, i32
  }
  func.func @transform_2(%arg0: i32) -> (i32, i32, i32) {
    %c0_i32 = arith.constant 0 : i32
    %c0_i32_0 = arith.constant 0 : i32
    %c0_i32_1 = arith.constant 0 : i32
    return %arg0, %c0_i32, %c0_i32_0 : i32, i32, i32
  }
  func.func @transform_3(%arg0: i32) -> (i32, i32) {
    %c0_i32 = arith.constant 0 : i32
    %c0_i32_0 = arith.constant 0 : i32
    %c0_i32_1 = arith.constant 0 : i32
    return %c0_i32, %c0_i32_0 : i32, i32
  }
  func.func @transform_4(%arg0: i32) -> (i32, i32) {
    %c0_i32 = arith.constant 0 : i32
    %c0_i32_0 = arith.constant 0 : i32
    %c0_i32_1 = arith.constant 0 : i32
    return %c0_i32, %c0_i32_0 : i32, i32
  }
  func.func @transform_5(%arg0: i32) -> (i32, i32) {
    %c0_i32 = arith.constant 0 : i32
    %c0_i32_0 = arith.constant 0 : i32
    %c0_i32_1 = arith.constant 0 : i32
    return %c0_i32, %c0_i32_0 : i32, i32
  }
  func.func @transform_6(%arg0: i32) -> (i32, i32) {
    %c0_i32 = arith.constant 0 : i32
    %c0_i32_0 = arith.constant 0 : i32
    %c0_i32_1 = arith.constant 0 : i32
    return %c0_i32, %c0_i32_0 : i32, i32
  }
  func.func @transform_7(%arg0: i32) -> (i32, i32) {
    %c0_i32 = arith.constant 0 : i32
    %c0_i32_0 = arith.constant 0 : i32
    %c0_i32_1 = arith.constant 0 : i32
    return %c0_i32, %c0_i32_0 : i32, i32
  }
  func.func @transform_8(%arg0: i32) -> (i32, i32) {
    %c0_i32 = arith.constant 0 : i32
    %c0_i32_0 = arith.constant 0 : i32
    %c0_i32_1 = arith.constant 0 : i32
    return %c0_i32, %c0_i32_0 : i32, i32
  }
  func.func @transform_9(%arg0: i32) -> (i32, i32) {
    %c0_i32 = arith.constant 0 : i32
    %c0_i32_0 = arith.constant 0 : i32
    %c0_i32_1 = arith.constant 0 : i32
    return %c0_i32, %c0_i32_0 : i32, i32
  }
  func.func @transform_10(%arg0: i32) -> (i32, i32) {
    %c0_i32 = arith.constant 0 : i32
    %c0_i32_0 = arith.constant 0 : i32
    %c0_i32_1 = arith.constant 0 : i32
    return %c0_i32, %c0_i32_0 : i32, i32
  }
  func.func @transform_11(%arg0: i32) -> (i32, i32) {
    %c0_i32 = arith.constant 0 : i32
    %c0_i32_0 = arith.constant 0 : i32
    %c0_i32_1 = arith.constant 0 : i32
    return %c0_i32, %c0_i32_0 : i32, i32
  }
  func.func @transform_12(%arg0: i32) -> (i32, i32) {
    %c0_i32 = arith.constant 0 : i32
    %c0_i32_0 = arith.constant 0 : i32
    %c0_i32_1 = arith.constant 0 : i32
    return %c0_i32, %c0_i32_0 : i32, i32
  }
  func.func @transform_13(%arg0: i32) -> (i32, i32) {
    %c0_i32 = arith.constant 0 : i32
    %c0_i32_0 = arith.constant 0 : i32
    %c0_i32_1 = arith.constant 0 : i32
    return %c0_i32, %c0_i32_0 : i32, i32
  }
  func.func @transform_14(%arg0: i32) -> (i32, i32) {
    %c0_i32 = arith.constant 0 : i32
    %c0_i32_0 = arith.constant 0 : i32
    %c0_i32_1 = arith.constant 0 : i32
    return %c0_i32, %c0_i32_0 : i32, i32
  }
  func.func @transform_15(%arg0: i32) -> (i32, i32) {
    %c0_i32 = arith.constant 0 : i32
    %c0_i32_0 = arith.constant 0 : i32
    %c0_i32_1 = arith.constant 0 : i32
    return %c0_i32, %c0_i32_0 : i32, i32
  }
  func.func @transform_16(%arg0: i32) -> (i32, i32) {
    %c0_i32 = arith.constant 0 : i32
    %c0_i32_0 = arith.constant 0 : i32
    %c0_i32_1 = arith.constant 0 : i32
    return %c0_i32, %c0_i32_0 : i32, i32
  }
  func.func @transform_17(%arg0: i32) -> (i32, i32, i32) {
    %c0_i32 = arith.constant 0 : i32
    %c0_i32_0 = arith.constant 0 : i32
    %c0_i32_1 = arith.constant 0 : i32
    return %arg0, %c0_i32, %c0_i32_0 : i32, i32, i32
  }
}

</mosaic_0001>

<llo_original>
// kernel: gnn_forward.4
$region0: #{gnn_forward.4}
  #allocation0 [shape = 'u32[]', space=smem, size = 0x4, offset = 0x4, fixed_abs, tag = 'smem constant byte address 0x4 - core index']
  #allocation1 [shape = 'u32[72,128]{1,0:T(1,128)}', space=vmem, size = 0x9000, scoped, tag = 'internal scratch']
  %s0 = inlined_call_operand.vmem [shape: f32[2,16,8], index: 0, kind: input, shape index: {}]
  %s1 = inlined_call_operand.vmem [shape: bf16[2,16,16], index: 1, kind: input, shape index: {}]
  %s2 = inlined_call_operand.vmem [shape: f32[1,8], index: 2, kind: input, shape index: {}, may-alias: {2,5}]
  %s3 = inlined_call_operand.vmem [shape: f32[1,8], index: 3, kind: input, shape index: {}, may-alias: {3,4}]
  %s4 = inlined_call_operand.vmem [shape: f32[1,8], index: 4, kind: input, shape index: {}, may-alias: {3,4}]
  %s5 = inlined_call_operand.vmem [shape: f32[1,8], index: 5, kind: input, shape index: {}, may-alias: {2,5}]
  %s6 = inlined_call_operand.vmem [shape: bf16[8,128], index: 6, kind: input, shape index: {}]
  %s7 = inlined_call_operand.vmem [shape: f32[1,128], index: 7, kind: input, shape index: {}]
  %s8 = inlined_call_operand.vmem [shape: bf16[2,16,128], index: 8, kind: output, shape index: {0}]
  %s9 = inlined_call_operand.vmem [shape: f32[2,1,128], index: 9, kind: output, shape index: {1}]
  %s10 = inlined_call_operand.vmem [shape: f32[2,1,128], index: 10, kind: output, shape index: {2}]
  %11 = xla_tuple %s8, %s9, %s10
  %s12 = sld [smem:[#allocation0]]
  $region81: #{gnn_forward.4} parent=0
    _
  %s14 = ssub.s32 1, %s12
  %s15 = scalar_select 0, %s14, %s12
  loop: start=0, step=1, limit=4
  $region2: #{gnn_forward.4} parent=0 // loop_pre_header
    _
  $region3: #{gnn_forward.4} parent=0 // loop_header
    %s17 = sphi 0, %s21
    %p18 = scmp.ge.s32.totalorder %s17, 4
    %s27 = sphi 0, %s29
    %s30 = sphi 0, %s27
    %s31 = sphi 0, %s30
    %s47 = sphi 0, %s31
    %s53 = sphi 0, %s55
    %s56 = sphi 0, %s53
    %s57 = sphi 0, %s56
    %s73 = sphi 0, %s57
    %s77 = sphi 0, %s77
    %s79 = sphi 0, %s77
    %s80 = sphi 0, %s79
    %s94 = sphi 0, %s80
    %s98 = sphi 0, %s98
    %s100 = sphi 0, %s98
    %s101 = sphi 0, %s100
    %s115 = sphi 0, %s101
    %s119 = sphi 0, %s119
    %s121 = sphi 0, %s119
    %s122 = sphi 0, %s121
    %s136 = sphi 0, %s122
    %s140 = sphi 0, %s140
    %s142 = sphi 0, %s140
    %s143 = sphi 0, %s142
    %s157 = sphi 0, %s143
    %s161 = sphi 0, %s161
    %s163 = sphi 0, %s161
    %s164 = sphi 0, %s163
    %s178 = sphi 0, %s164
    %s182 = sphi 0, %s182
    %s184 = sphi 0, %s182
    %s185 = sphi 0, %s184
    %s199 = sphi 0, %s185
    %s205 = sphi 0, %s207
    %s208 = sphi 0, %s205
    %s209 = sphi 0, %s208
    %s225 = sphi 0, %s209
    %s231 = sphi 0, %s233
    %s234 = sphi 0, %s231
    %s235 = sphi 0, %s234
    %s251 = sphi 0, %s235
    %s257 = sphi 0, %s259
    %s260 = sphi 0, %s257
    %s261 = sphi 0, %s260
    %s277 = sphi 0, %s261
  $region4: #{gnn_forward.4} parent=0 // loop_header_branch
    %20 = sbr.rel (%p18) target = $region8
  $region5: #{gnn_forward.4} parent=0 // loop_body
    %s22 = ssub.s32 %s17, 1
    %s23 = ssub.s32 %s17, 2
    %s24 = sadd.s32 %s17, 1
    %s25 = ssub.s32 %s17, %s24
    %p26 = scmp.eq.s32.totalorder %s25, 0
    %s28 = sadd.s32 %s27, 1
    %s29 = scalar_select %p26, %s27, %s28
    %p32 = pneg %p26
    %p33 = scmp.eq.s32.totalorder %s17, 1
    %p34 = por %p32, %p33
    %p35 = scmp.ne.s32.totalorder %s27, %s30
    %p36 = scmp.eq.s32.totalorder %s17, 0
    %p37 = por %p35, %p36
    %p38 = scmp.ne.s32.totalorder %s27, %s30
    %p39 = scmp.eq.s32.totalorder %s22, 1
    %p40 = por %p38, %p39
    %p41 = scmp.ne.s32.totalorder %s30, %s31
    %p42 = scmp.eq.s32.totalorder %s22, 0
    %p43 = por %p41, %p42
    %p44 = scmp.ne.s32.totalorder %s30, %s31
    %p45 = scmp.eq.s32.totalorder %s23, 1
    %p46 = por %p44, %p45
    %p48 = scmp.ne.s32.totalorder %s31, %s47
    %p49 = scmp.eq.s32.totalorder %s23, 0
    %p50 = por %p48, %p49
    %s51 = ssub.s32 %s17, %s24
    %p52 = scmp.eq.s32.totalorder %s51, 0
    %s54 = sadd.s32 %s53, 1
    %s55 = scalar_select %p52, %s53, %s54
    %p58 = pneg %p52
    %p59 = scmp.eq.s32.totalorder %s17, 1
    %p60 = por %p58, %p59
    %p61 = scmp.ne.s32.totalorder %s53, %s56
    %p62 = scmp.eq.s32.totalorder %s17, 0
    %p63 = por %p61, %p62
    %p64 = scmp.ne.s32.totalorder %s53, %s56
    %p65 = scmp.eq.s32.totalorder %s22, 1
    %p66 = por %p64, %p65
    %p67 = scmp.ne.s32.totalorder %s56, %s57
    %p68 = scmp.eq.s32.totalorder %s22, 0
    %p69 = por %p67, %p68
    %p70 = scmp.ne.s32.totalorder %s56, %s57
    %p71 = scmp.eq.s32.totalorder %s23, 1
    %p72 = por %p70, %p71
    %p74 = scmp.ne.s32.totalorder %s57, %s73
    %p75 = scmp.eq.s32.totalorder %s23, 0
    %p76 = por %p74, %p75
    %s78 = sadd.s32 %s77, 1
    %p81 = scmp.eq.s32.totalorder %s17, 1
    %p82 = scmp.ne.s32.totalorder %s77, %s79
    %p83 = scmp.eq.s32.totalorder %s17, 0
    %p84 = por %p82, %p83
    %p85 = scmp.ne.s32.totalorder %s77, %s79
    %p86 = scmp.eq.s32.totalorder %s22, 1
    %p87 = por %p85, %p86
    %p88 = scmp.ne.s32.totalorder %s79, %s80
    %p89 = scmp.eq.s32.totalorder %s22, 0
    %p90 = por %p88, %p89
    %p91 = scmp.ne.s32.totalorder %s79, %s80
    %p92 = scmp.eq.s32.totalorder %s23, 1
    %p93 = por %p91, %p92
    %p95 = scmp.ne.s32.totalorder %s80, %s94
    %p96 = scmp.eq.s32.totalorder %s23, 0
    %p97 = por %p95, %p96
    %s99 = sadd.s32 %s98, 1
    %p102 = scmp.eq.s32.totalorder %s17, 1
    %p103 = scmp.ne.s32.totalorder %s98, %s100
    %p104 = scmp.eq.s32.totalorder %s17, 0
    %p105 = por %p103, %p104
    %p106 = scmp.ne.s32.totalorder %s98, %s100
    %p107 = scmp.eq.s32.totalorder %s22, 1
    %p108 = por %p106, %p107
    %p109 = scmp.ne.s32.totalorder %s100, %s101
    %p110 = scmp.eq.s32.totalorder %s22, 0
    %p111 = por %p109, %p110
    %p112 = scmp.ne.s32.totalorder %s100, %s101
    %p113 = scmp.eq.s32.totalorder %s23, 1
    %p114 = por %p112, %p113
    %p116 = scmp.ne.s32.totalorder %s101, %s115
    %p117 = scmp.eq.s32.totalorder %s23, 0
    %p118 = por %p116, %p117
    %s120 = sadd.s32 %s119, 1
    %p123 = scmp.eq.s32.totalorder %s17, 1
    %p124 = scmp.ne.s32.totalorder %s119, %s121
    %p125 = scmp.eq.s32.totalorder %s17, 0
    %p126 = por %p124, %p125
    %p127 = scmp.ne.s32.totalorder %s119, %s121
    %p128 = scmp.eq.s32.totalorder %s22, 1
    %p129 = por %p127, %p128
    %p130 = scmp.ne.s32.totalorder %s121, %s122
    %p131 = scmp.eq.s32.totalorder %s22, 0
    %p132 = por %p130, %p131
    %p133 = scmp.ne.s32.totalorder %s121, %s122
    %p134 = scmp.eq.s32.totalorder %s23, 1
    %p135 = por %p133, %p134
    %p137 = scmp.ne.s32.totalorder %s122, %s136
    %p138 = scmp.eq.s32.totalorder %s23, 0
    %p139 = por %p137, %p138
    %s141 = sadd.s32 %s140, 1
    %p144 = scmp.eq.s32.totalorder %s17, 1
    %p145 = scmp.ne.s32.totalorder %s140, %s142
    %p146 = scmp.eq.s32.totalorder %s17, 0
    %p147 = por %p145, %p146
    %p148 = scmp.ne.s32.totalorder %s140, %s142
    %p149 = scmp.eq.s32.totalorder %s22, 1
    %p150 = por %p148, %p149
    %p151 = scmp.ne.s32.totalorder %s142, %s143
    %p152 = scmp.eq.s32.totalorder %s22, 0
    %p153 = por %p151, %p152
    %p154 = scmp.ne.s32.totalorder %s142, %s143
    %p155 = scmp.eq.s32.totalorder %s23, 1
    %p156 = por %p154, %p155
    %p158 = scmp.ne.s32.totalorder %s143, %s157
    %p159 = scmp.eq.s32.totalorder %s23, 0
    %p160 = por %p158, %p159
    %s162 = sadd.s32 %s161, 1
    %p165 = scmp.eq.s32.totalorder %s17, 1
    %p166 = scmp.ne.s32.totalorder %s161, %s163
    %p167 = scmp.eq.s32.totalorder %s17, 0
    %p168 = por %p166, %p167
    %p169 = scmp.ne.s32.totalorder %s161, %s163
    %p170 = scmp.eq.s32.totalorder %s22, 1
    %p171 = por %p169, %p170
    %p172 = scmp.ne.s32.totalorder %s163, %s164
    %p173 = scmp.eq.s32.totalorder %s22, 0
    %p174 = por %p172, %p173
    %p175 = scmp.ne.s32.totalorder %s163, %s164
    %p176 = scmp.eq.s32.totalorder %s23, 1
    %p177 = por %p175, %p176
    %p179 = scmp.ne.s32.totalorder %s164, %s178
    %p180 = scmp.eq.s32.totalorder %s23, 0
    %p181 = por %p179, %p180
    %s183 = sadd.s32 %s182, 1
    %p186 = scmp.eq.s32.totalorder %s17, 1
    %p187 = scmp.ne.s32.totalorder %s182, %s184
    %p188 = scmp.eq.s32.totalorder %s17, 0
    %p189 = por %p187, %p188
    %p190 = scmp.ne.s32.totalorder %s182, %s184
    %p191 = scmp.eq.s32.totalorder %s22, 1
    %p192 = por %p190, %p191
    %p193 = scmp.ne.s32.totalorder %s184, %s185
    %p194 = scmp.eq.s32.totalorder %s22, 0
    %p195 = por %p193, %p194
    %p196 = scmp.ne.s32.totalorder %s184, %s185
    %p197 = scmp.eq.s32.totalorder %s23, 1
    %p198 = por %p196, %p197
    %p200 = scmp.ne.s32.totalorder %s185, %s199
    %p201 = scmp.eq.s32.totalorder %s23, 0
    %p202 = por %p200, %p201
    %s203 = ssub.s32 %s17, %s24
    %p204 = scmp.eq.s32.totalorder %s203, 0
    %s206 = sadd.s32 %s205, 1
    %s207 = scalar_select %p204, %s205, %s206
    %p210 = pneg %p204
    %p211 = scmp.eq.s32.totalorder %s17, 1
    %p212 = por %p210, %p211
    %p213 = scmp.ne.s32.totalorder %s205, %s208
    %p214 = scmp.eq.s32.totalorder %s17, 0
    %p215 = por %p213, %p214
    %p216 = scmp.ne.s32.totalorder %s205, %s208
    %p217 = scmp.eq.s32.totalorder %s22, 1
    %p218 = por %p216, %p217
    %p219 = scmp.ne.s32.totalorder %s208, %s209
    %p220 = scmp.eq.s32.totalorder %s22, 0
    %p221 = por %p219, %p220
    %p222 = scmp.ne.s32.totalorder %s208, %s209
    %p223 = scmp.eq.s32.totalorder %s23, 1
    %p224 = por %p222, %p223
    %p226 = scmp.ne.s32.totalorder %s209, %s225
    %p227 = scmp.eq.s32.totalorder %s23, 0
    %p228 = por %p226, %p227
    %s229 = ssub.s32 %s17, %s24
    %p230 = scmp.eq.s32.totalorder %s229, 0
    %s232 = sadd.s32 %s231, 1
    %s233 = scalar_select %p230, %s231, %s232
    %p236 = pneg %p230
    %p237 = scmp.eq.s32.totalorder %s17, 1
    %p238 = por %p236, %p237
    %p239 = scmp.ne.s32.totalorder %s231, %s234
    %p240 = scmp.eq.s32.totalorder %s17, 0
    %p241 = por %p239, %p240
    %p242 = scmp.ne.s32.totalorder %s231, %s234
    %p243 = scmp.eq.s32.totalorder %s22, 1
    %p244 = por %p242, %p243
    %p245 = scmp.ne.s32.totalorder %s234, %s235
    %p246 = scmp.eq.s32.totalorder %s22, 0
    %p247 = por %p245, %p246
    %p248 = scmp.ne.s32.totalorder %s234, %s235
    %p249 = scmp.eq.s32.totalorder %s23, 1
    %p250 = por %p248, %p249
    %p252 = scmp.ne.s32.totalorder %s235, %s251
    %p253 = scmp.eq.s32.totalorder %s23, 0
    %p254 = por %p252, %p253
    %s255 = ssub.s32 %s17, %s24
    %p256 = scmp.eq.s32.totalorder %s255, 0
    %s258 = sadd.s32 %s257, 1
    %s259 = scalar_select %p256, %s257, %s258
    %p262 = pneg %p256
    %p263 = scmp.eq.s32.totalorder %s17, 1
    %p264 = por %p262, %p263
    %p265 = scmp.ne.s32.totalorder %s257, %s260
    %p266 = scmp.eq.s32.totalorder %s17, 0
    %p267 = por %p265, %p266
    %p268 = scmp.ne.s32.totalorder %s257, %s260
    %p269 = scmp.eq.s32.totalorder %s22, 1
    %p270 = por %p268, %p269
    %p271 = scmp.ne.s32.totalorder %s260, %s261
    %p272 = scmp.eq.s32.totalorder %s22, 0
    %p273 = por %p271, %p272
    %p274 = scmp.ne.s32.totalorder %s260, %s261
    %p275 = scmp.eq.s32.totalorder %s23, 1
    %p276 = por %p274, %p275
    %p278 = scmp.ne.s32.totalorder %s261, %s277
    %p279 = scmp.eq.s32.totalorder %s23, 0
    %p280 = por %p278, %p279
    %p281 = scmp.le.s32.totalorder 1, %s17
    %p282 = scmp.lt.s32.totalorder %s17, 3
    %p283 = pnand %p281, %p282
    %p284 = pneg %p283
    // Predicated region
    $region9: #{gnn_forward.4} parent=5 // pred_check
      _
    $region10: #{gnn_forward.4} parent=5 // pred_check_branch
      %286 = sbr.rel (%p283) target = $region12
    $region11: #{gnn_forward.4} parent=5 // pred_region
      %s287 = ssub.s32 %s17, 1
      // Predicated region
      $region13: #{gnn_forward.4} parent=11 // pred_check
        %p288 = pneg %p90
      $region14: #{gnn_forward.4} parent=11 // pred_check_branch
        %290 = sbr.rel (%p288) target = $region16
      $region15: #{gnn_forward.4} parent=11 // pred_region
        _
      $region16: #{gnn_forward.4} parent=11 // pred_fallthru
        _
      // Predicated region
      $region17: #{gnn_forward.4} parent=11 // pred_check
        %p291 = pneg %p111
      $region18: #{gnn_forward.4} parent=11 // pred_check_branch
        %293 = sbr.rel (%p291) target = $region20
      $region19: #{gnn_forward.4} parent=11 // pred_region
        _
      $region20: #{gnn_forward.4} parent=11 // pred_fallthru
        _
      // Predicated region
      $region21: #{gnn_forward.4} parent=11 // pred_check
        %p294 = pneg %p132
      $region22: #{gnn_forward.4} parent=11 // pred_check_branch
        %296 = sbr.rel (%p294) target = $region24
      $region23: #{gnn_forward.4} parent=11 // pred_region
        _
      $region24: #{gnn_forward.4} parent=11 // pred_fallthru
        _
      // Predicated region
      $region25: #{gnn_forward.4} parent=11 // pred_check
        %p297 = pneg %p153
      $region26: #{gnn_forward.4} parent=11 // pred_check_branch
        %299 = sbr.rel (%p297) target = $region28
      $region27: #{gnn_forward.4} parent=11 // pred_region
        _
      $region28: #{gnn_forward.4} parent=11 // pred_fallthru
        _
      // Predicated region
      $region29: #{gnn_forward.4} parent=11 // pred_check
        %p300 = pneg %p174
      $region30: #{gnn_forward.4} parent=11 // pred_check_branch
        %302 = sbr.rel (%p300) target = $region32
      $region31: #{gnn_forward.4} parent=11 // pred_region
        _
      $region32: #{gnn_forward.4} parent=11 // pred_fallthru
        _
      // Predicated region
      $region33: #{gnn_forward.4} parent=11 // pred_check
        %p303 = pneg %p195
      $region34: #{gnn_forward.4} parent=11 // pred_check_branch
        %305 = sbr.rel (%p303) target = $region36
      $region35: #{gnn_forward.4} parent=11 // pred_region
        _
      $region36: #{gnn_forward.4} parent=11 // pred_fallthru
        _
    $region12: #{gnn_forward.4} parent=5 // pred_fallthru
      _
    %p306 = scmp.lt.s32.totalorder %s17, 2
    // Predicated region
    $region37: #{gnn_forward.4} parent=5 // pred_check
      %p307 = pneg %p306
    $region38: #{gnn_forward.4} parent=5 // pred_check_branch
      %309 = sbr.rel (%p307) target = $region40
    $region39: #{gnn_forward.4} parent=5 // pred_region
      // Predicated region
      $region41: #{gnn_forward.4} parent=39 // pred_check
        %p310 = pneg %p37
      $region42: #{gnn_forward.4} parent=39 // pred_check_branch
        %312 = sbr.rel (%p310) target = $region44
      $region43: #{gnn_forward.4} parent=39 // pred_region
        %p313 = scmp.lt.s32.totalorder %s17, 1
        %s314 = scalar_select %p313, %s17, 1
        %s315 = smul.addr %s314, 2
        %s316 = smul.addr %s315, 8
        %s317 = scalar_lea.vmem %s0, %s316
      $region44: #{gnn_forward.4} parent=39 // pred_fallthru
        _
      // Predicated region
      $region45: #{gnn_forward.4} parent=39 // pred_check
        %p318 = pneg %p63
      $region46: #{gnn_forward.4} parent=39 // pred_check_branch
        %320 = sbr.rel (%p318) target = $region48
      $region47: #{gnn_forward.4} parent=39 // pred_region
        %p321 = scmp.lt.s32.totalorder %s17, 1
        %s322 = scalar_select %p321, %s17, 1
        %s323 = smul.addr %s322, 2
        %s324 = smul.addr %s323, 4
        %s325 = scalar_lea.vmem %s1, %s324
      $region48: #{gnn_forward.4} parent=39 // pred_fallthru
        _
    $region40: #{gnn_forward.4} parent=5 // pred_fallthru
      _
    %p326 = scmp.le.s32.totalorder 1, %s17
    %p327 = scmp.lt.s32.totalorder %s17, 3
    %p328 = pnand %p326, %p327
    %p329 = pneg %p328
    // Predicated region
    $region49: #{gnn_forward.4} parent=5 // pred_check
      _
    $region50: #{gnn_forward.4} parent=5 // pred_check_branch
      %331 = sbr.rel (%p328) target = $region52
    $region51: #{gnn_forward.4} parent=5 // pred_region
      %s332 = ssub.s32 %s17, 1
      %p333 = scmp.lt.s32.totalorder %s22, 1
      %s334 = scalar_select %p333, %s22, 1
      %s335 = smul.addr %s334, 2
      %s336 = smul.addr %s335, 8
      %s337 = scalar_lea.vmem %s0, %s336
      %p338 = pneg %p43
      %p339 = pneg %p40
      %p340 = scmp.lt.s32.totalorder %s22, 1
      %s341 = scalar_select %p340, %s22, 1
      %s342 = smul.addr %s341, 2
      %s343 = smul.addr %s342, 4
      %s344 = scalar_lea.vmem %s1, %s343
      %p345 = pneg %p69
      %p346 = pneg %p66
      %p347 = pneg %p90
      %p348 = pneg %p87
      %p349 = pneg %p111
      %p350 = pneg %p108
      %p351 = pneg %p132
      %p352 = pneg %p129
      %p353 = pneg %p153
      %p354 = pneg %p150
      %p355 = pneg %p174
      %p356 = pneg %p171
      %p357 = pneg %p195
      %p358 = pneg %p192
      %p359 = pneg %p221
      %p360 = pneg %p218
      %p361 = scmp.lt.s32.totalorder %s22, 1
      %s362 = scalar_select %p361, %s22, 1
      %s363 = smul.addr %s362, 2
      %s364 = smul.addr %s363, 4
      %s365 = scalar_lea.vmem %s8, %s364
      %p366 = pneg %p247
      %p367 = pneg %p244
      %p368 = scmp.lt.s32.totalorder %s22, 1
      %s369 = scalar_select %p368, %s22, 1
      %s370 = scalar_lea.vmem %s9, %s369
      %p371 = pneg %p273
      %p372 = pneg %p270
      %p373 = scmp.lt.s32.totalorder %s22, 1
      %s374 = scalar_select %p373, %s22, 1
      %s375 = scalar_lea.vmem %s10, %s374
      %p376 = scmp.lt.s32.totalorder %s22, 1
      %s377 = scalar_select %p376, %s22, 1
      %s378 = smul.addr %s377, 2
      %s379 = smul.addr %s378, 8
      %s380 = scalar_lea.vmem %s0, %s379
      %p381 = scmp.lt.s32.totalorder %s22, 1
      %s382 = scalar_select %p381, %s22, 1
      %s383 = smul.addr %s382, 2
      %s384 = smul.addr %s383, 4
      %s385 = scalar_lea.vmem %s1, %s384
      %p386 = scmp.lt.s32.totalorder %s22, 1
      %s387 = scalar_select %p386, %s22, 1
      %s388 = smul.addr %s387, 2
      %s389 = smul.addr %s388, 4
      %s390 = scalar_lea.vmem %s8, %s389
      %p391 = scmp.lt.s32.totalorder %s22, 1
      %s392 = scalar_select %p391, %s22, 1
      %s393 = scalar_lea.vmem %s9, %s392
      %p394 = scmp.lt.s32.totalorder %s22, 1
      %s395 = scalar_select %p394, %s22, 1
      %s396 = scalar_lea.vmem %s10, %s395
      %v399 = vld [vmem:[%s380] sm:$0xff]
      %v400 = vld [vmem:[%s380 + $0x8] sm:$0xff]
      %v401 = vld [vmem:[%s2] sm:$0x1]
      %v403 = vperm.slane %v401, 0
      %v405 = vsub.f32 %v399, %v403
      %v406 = vsub.f32 %v400, %v403
      %v407 = vld [vmem:[%s3] sm:$0x1]
      %v409 = vperm.slane %v407, 0
      %v411 = vmul.f32 %v405, %v409
      %v412 = vmul.f32 %v406, %v409
      %v413 = vld [vmem:[%s4] sm:$0x1]
      %v415 = vperm.slane %v413, 0
      %v417 = vmul.f32 %v411, %v415
      %v418 = vmul.f32 %v412, %v415
      %v419 = vld [vmem:[%s5] sm:$0x1]
      %v421 = vperm.slane %v419, 0
      %v423 = vadd.f32 %v417, %v421
      %v424 = vadd.f32 %v418, %v421
      %v425 = vld [vmem:[%s385] sm:$0xf]
      %v426 = vld [vmem:[%s385 + $0x4] sm:$0xf]
      %v427 = vlaneseq
      %v428 = vshrl.u32 %v427, 7
      %v429 = vadd.s32 %v428, 8
      %v430 = vlaneseq
      %v431 = vand.u32 %v430, 127
      %vm432 = vcmp.eq.s32.totalorder %v428, %v431
      %vm433 = vcmp.eq.s32.totalorder %v429, %v431
      %vm434 = vmpackc.low %vm432, %vm432
      %vm435 = vmpackc.low %vm433, %vm433
      %v436 = vsel %vm434, 1065369472, %v425
      %v437 = vsel %vm435, 1065369472, %v426
      %v438 = vunpack.c.l.bf16 %v436
      %v439 = vunpack.c.l.bf16 %v437
      %vm440 = vcmask 130048
      %v441 = vsel %vm440, %v438, 0.0
      %442 = vadd.xlane.f32.xlu0 %v441
      %v443 = vpop.xlane.xlu0 %442
      %v444 = vsel %vm440, %v439, 0.0
      %445 = vadd.xlane.f32.xlu0 %v444
      %v446 = vpop.xlane.xlu0 %445
      %v447 = vmax.f32 %v443, 1.0
      %v448 = vmax.f32 %v446, 1.0
      %v449 = vrsqrt.pop %v447
      %v450 = vmul.f32 %v449, %v447
      %v451 = vmul.f32 %v450, %v449
      %v452 = vmul.f32 0.5, %v451
      %v453 = vsub.f32 1.5, %v452
      %v454 = vmul.f32 %v449, %v453
      %vm455 = vweird.f32 %v447
      %vm456 = vweird.f32 %v449
      %vm457 = vmor %vm455, %vm456
      %v458 = vsel %vm457, %v449, %v454
      %v459 = vrsqrt.pop %v448
      %v460 = vmul.f32 %v459, %v448
      %v461 = vmul.f32 %v460, %v459
      %v462 = vmul.f32 0.5, %v461
      %v463 = vsub.f32 1.5, %v462
      %v464 = vmul.f32 %v459, %v463
      %vm465 = vweird.f32 %v448
      %vm466 = vweird.f32 %v459
      %vm467 = vmor %vm465, %vm466
      %v468 = vsel %vm467, %v459, %v464
      %v469 = vpack.c.bf16 %v424, %v423
      %v470 = vld [vmem:[%s6] sm:$0xf]
      %vm471 = vcmask 64512
      %v473 = vsel %vm471, %v469, 0
      %vm475 = vcmask 1043456
      %v477 = vsel %vm475, %v470, 0
      %479 = vmatpush.bf16.msra.mxu0 0
      %480 = vmatpush.bf16.msra.mxu0 0
      %481 = vmatpush.bf16.msra.mxu0 0
      %482 = vmatpush.bf16.msra.mxu0 0
      %483 = vmatpush.bf16.msra.mxu0 0
      %484 = vmatpush.bf16.msra.mxu0 0
      %485 = vmatpush.bf16.msra.mxu0 0
      %486 = vmatpush.bf16.msra.mxu0 %v477
      %487 = vmatmul.bf16.gmra.mxu0 %v473
      %v488 = vpop.f32.mrf.mxu0
      %v489 = vadd.f32 0.0, %v488
      %v490 = vpop.f32.mrf.mxu0
      %v491 = vadd.f32 0.0, %v490
      %492 = vdwg.mxu0
      %v493 = vmul.f32 %v489, %v458
      %v494 = vmul.f32 %v491, %v468
      %v495 = vpack.c.bf16 %v494, %v493
      %v498 = vunpack.c.l.b16 %v436
      %v499 = vunpack.c.l.b16 %v437
      %v500 = vpack.c.b16 %v499, %v498
      %v502 = vsel %vm440, %v500, 0
      %504 = vmatpush.bf16.msra.mxu0 0
      %505 = vmatpush.bf16.msra.mxu0 0
      %506 = vmatpush.bf16.msra.mxu0 0
      %507 = vmatpush.bf16.msra.mxu0 0
      %508 = vmatpush.bf16.msra.mxu0 0
      %509 = vmatpush.bf16.msra.mxu0 0
      %510 = vmatpush.bf16.msra.mxu0 0
      %511 = vmatpush.bf16.msra.mxu0 %v495
      %512 = vmatmul.bf16.gmra.mxu0 %v502
      %v513 = vpop.f32.mrf.mxu0
      %v514 = vadd.f32 0.0, %v513
      %v515 = vpop.f32.mrf.mxu0
      %v516 = vadd.f32 0.0, %v515
      %517 = vdwg.mxu0
      %v518 = vmul.f32 %v514, %v458
      %v519 = vmul.f32 %v516, %v468
      %v520 = vld [vmem:[%s7] sm:$0x1]
      %v522 = vperm.slane %v520, 0
      %v524 = vadd.f32 %v518, %v522
      %v525 = vadd.f32 %v519, %v522
      %v526 = vmax.f32 %v524, 0.0
      %v527 = vmax.f32 %v525, 0.0
      %v528 = vadd.f32 %v526, %v527
      %v529 = vrot.slane %v528, 4
      %v530 = vadd.f32 %v528, %v529
      %v531 = vrot.slane %v530, 2
      %v532 = vadd.f32 %v530, %v531
      %v533 = vrot.slane %v532, 1
      %v534 = vadd.f32 %v532, %v533
      %v535 = vrcp.pop 16.0
      %v536 = vmul.f32 16.0, %v535
      %v537 = vsub.f32 1.0, %v536
      %v538 = vmul.f32 %v535, %v537
      %v539 = vadd.f32 %v535, %v538
      %vm540 = vweird.f32 %v535
      %v541 = vsel %vm540, %v535, %v539
      %v542 = vmul.f32 %v534, %v541
      %v543 = vsub.f32 %v526, %v542
      %v544 = vsub.f32 %v527, %v542
      %545 = vst [vmem:[%s393] sm:$0x1] %v542
      %v546 = vmul.f32 %v543, %v543
      %v547 = vmul.f32 %v544, %v544
      %v548 = vadd.f32 %v546, %v547
      %v549 = vrot.slane %v548, 4
      %v550 = vadd.f32 %v548, %v549
      %v551 = vrot.slane %v550, 2
      %v552 = vadd.f32 %v550, %v551
      %v553 = vrot.slane %v552, 1
      %v554 = vadd.f32 %v552, %v553
      %555 = vst [vmem:[%s396] sm:$0x1] %v554
      %v556 = vpack.c.bf16 %v526, %v526
      %v557 = vpack.c.bf16 %v527, %v527
      %558 = vst [vmem:[%s390] sm:$0xf] %v556
      %559 = vst [vmem:[%s390 + $0x4] sm:$0xf] %v557
      %p560 = scmp.lt.s32.totalorder %s22, 1
      %s561 = scalar_select %p560, %s22, 1
      %s562 = smul.addr %s561, 2
      %s563 = smul.addr %s562, 4
      %s564 = scalar_lea.vmem %s8, %s563
      %p565 = scmp.lt.s32.totalorder %s22, 1
      %s566 = scalar_select %p565, %s22, 1
      %s567 = scalar_lea.vmem %s9, %s566
      %p568 = scmp.lt.s32.totalorder %s22, 1
      %s569 = scalar_select %p568, %s22, 1
      %s570 = scalar_lea.vmem %s10, %s569
      // Predicated region
      $region53: #{gnn_forward.4} parent=51 // pred_check
        %p571 = pneg %p218
      $region54: #{gnn_forward.4} parent=51 // pred_check_branch
        %573 = sbr.rel (%p571) target = $region56
      $region55: #{gnn_forward.4} parent=51 // pred_region
        _
      $region56: #{gnn_forward.4} parent=51 // pred_fallthru
        _
      // Predicated region
      $region57: #{gnn_forward.4} parent=51 // pred_check
        %p574 = pneg %p244
      $region58: #{gnn_forward.4} parent=51 // pred_check_branch
        %576 = sbr.rel (%p574) target = $region60
      $region59: #{gnn_forward.4} parent=51 // pred_region
        _
      $region60: #{gnn_forward.4} parent=51 // pred_fallthru
        _
      // Predicated region
      $region61: #{gnn_forward.4} parent=51 // pred_check
        %p577 = pneg %p270
      $region62: #{gnn_forward.4} parent=51 // pred_check_branch
        %579 = sbr.rel (%p577) target = $region64
      $region63: #{gnn_forward.4} parent=51 // pred_region
        _
      $region64: #{gnn_forward.4} parent=51 // pred_fallthru
        _
    $region52: #{gnn_forward.4} parent=5 // pred_fallthru
      _
    %p580 = scmp.le.s32.totalorder 2, %s17
    // Predicated region
    $region65: #{gnn_forward.4} parent=5 // pred_check
      %p581 = pneg %p580
    $region66: #{gnn_forward.4} parent=5 // pred_check_branch
      %583 = sbr.rel (%p581) target = $region68
    $region67: #{gnn_forward.4} parent=5 // pred_region
      %s584 = ssub.s32 %s17, 2
      // Predicated region
      $region69: #{gnn_forward.4} parent=67 // pred_check
        %p585 = pneg %p224
      $region70: #{gnn_forward.4} parent=67 // pred_check_branch
        %587 = sbr.rel (%p585) target = $region72
      $region71: #{gnn_forward.4} parent=67 // pred_region
        %p588 = scmp.lt.s32.totalorder %s23, 1
        %s589 = scalar_select %p588, %s23, 1
        %s590 = smul.addr %s589, 2
        %s591 = smul.addr %s590, 4
        %s592 = scalar_lea.vmem %s8, %s591
      $region72: #{gnn_forward.4} parent=67 // pred_fallthru
        _
      // Predicated region
      $region73: #{gnn_forward.4} parent=67 // pred_check
        %p593 = pneg %p250
      $region74: #{gnn_forward.4} parent=67 // pred_check_branch
        %595 = sbr.rel (%p593) target = $region76
      $region75: #{gnn_forward.4} parent=67 // pred_region
        %p596 = scmp.lt.s32.totalorder %s23, 1
        %s597 = scalar_select %p596, %s23, 1
        %s598 = scalar_lea.vmem %s9, %s597
      $region76: #{gnn_forward.4} parent=67 // pred_fallthru
        _
      // Predicated region
      $region77: #{gnn_forward.4} parent=67 // pred_check
        %p599 = pneg %p276
      $region78: #{gnn_forward.4} parent=67 // pred_check_branch
        %601 = sbr.rel (%p599) target = $region80
      $region79: #{gnn_forward.4} parent=67 // pred_region
        %p602 = scmp.lt.s32.totalorder %s23, 1
        %s603 = scalar_select %p602, %s23, 1
        %s604 = scalar_lea.vmem %s10, %s603
      $region80: #{gnn_forward.4} parent=67 // pred_fallthru
        _
    $region68: #{gnn_forward.4} parent=5 // pred_fallthru
      _
  $region6: #{gnn_forward.4} parent=0 // loop_footer
    %s21 = sadd.s32 1, %s17
  $region7: #{gnn_forward.4} parent=0 // loop_footer_branch
    %16 = sbr.rel target = $region3
  $region8: #{gnn_forward.4} parent=0 // loop_exit
    _

// kernel: gnn_forward.5
$region0: #{gnn_forward.5}
  #allocation0 [shape = 'u32[]', space=smem, size = 0x4, offset = 0x4, fixed_abs, tag = 'smem constant byte address 0x4 - core index']
  #allocation1 [shape = 'u32[72,128]{1,0:T(1,128)}', space=vmem, size = 0x9000, scoped, tag = 'internal scratch']
  %s0 = inlined_call_operand.vmem [shape: bf16[2,16,128], index: 0, kind: input, shape index: {}]
  %s1 = inlined_call_operand.vmem [shape: bf16[2,16,16], index: 1, kind: input, shape index: {}]
  %s2 = inlined_call_operand.vmem [shape: f32[1,128], index: 2, kind: input, shape index: {}]
  %s3 = inlined_call_operand.vmem [shape: f32[1,128], index: 3, kind: input, shape index: {}]
  %s4 = inlined_call_operand.vmem [shape: f32[1,128], index: 4, kind: input, shape index: {}]
  %s5 = inlined_call_operand.vmem [shape: f32[1,128], index: 5, kind: input, shape index: {}]
  %s6 = inlined_call_operand.vmem [shape: bf16[128,128], index: 6, kind: input, shape index: {}]
  %s7 = inlined_call_operand.vmem [shape: f32[1,128], index: 7, kind: input, shape index: {}]
  %s8 = inlined_call_operand.vmem [shape: bf16[2,16,128], index: 8, kind: output, shape index: {0}]
  %s9 = inlined_call_operand.vmem [shape: f32[2,1,128], index: 9, kind: output, shape index: {1}]
  %s10 = inlined_call_operand.vmem [shape: f32[2,1,128], index: 10, kind: output, shape index: {2}]
  %11 = xla_tuple %s8, %s9, %s10
  %s12 = sld [smem:[#allocation0]]
  $region81: #{gnn_forward.5} parent=0
    _
  %s14 = ssub.s32 1, %s12
  %s15 = scalar_select 0, %s14, %s12
  loop: start=0, step=1, limit=4
  $region2: #{gnn_forward.5} parent=0 // loop_pre_header
    _
  $region3: #{gnn_forward.5} parent=0 // loop_header
    %s17 = sphi 0, %s21
    %p18 = scmp.ge.s32.totalorder %s17, 4
    %s27 = sphi 0, %s29
    %s30 = sphi 0, %s27
    %s31 = sphi 0, %s30
    %s47 = sphi 0, %s31
    %s53 = sphi 0, %s55
    %s56 = sphi 0, %s53
    %s57 = sphi 0, %s56
    %s73 = sphi 0, %s57
    %s77 = sphi 0, %s77
    %s79 = sphi 0, %s77
    %s80 = sphi 0, %s79
    %s94 = sphi 0, %s80
    %s98 = sphi 0, %s98
    %s100 = sphi 0, %s98
    %s101 = sphi 0, %s100
    %s115 = sphi 0, %s101
    %s119 = sphi 0, %s119
    %s121 = sphi 0, %s119
    %s122 = sphi 0, %s121
    %s136 = sphi 0, %s122
    %s140 = sphi 0, %s140
    %s142 = sphi 0, %s140
    %s143 = sphi 0, %s142
    %s157 = sphi 0, %s143
    %s161 = sphi 0, %s161
    %s163 = sphi 0, %s161
    %s164 = sphi 0, %s163
    %s178 = sphi 0, %s164
    %s182 = sphi 0, %s182
    %s184 = sphi 0, %s182
    %s185 = sphi 0, %s184
    %s199 = sphi 0, %s185
    %s205 = sphi 0, %s207
    %s208 = sphi 0, %s205
    %s209 = sphi 0, %s208
    %s225 = sphi 0, %s209
    %s231 = sphi 0, %s233
    %s234 = sphi 0, %s231
    %s235 = sphi 0, %s234
    %s251 = sphi 0, %s235
    %s257 = sphi 0, %s259
    %s260 = sphi 0, %s257
    %s261 = sphi 0, %s260
    %s277 = sphi 0, %s261
  $region4: #{gnn_forward.5} parent=0 // loop_header_branch
    %20 = sbr.rel (%p18) target = $region8
  $region5: #{gnn_forward.5} parent=0 // loop_body
    %s22 = ssub.s32 %s17, 1
    %s23 = ssub.s32 %s17, 2
    %s24 = sadd.s32 %s17, 1
    %s25 = ssub.s32 %s17, %s24
    %p26 = scmp.eq.s32.totalorder %s25, 0
    %s28 = sadd.s32 %s27, 1
    %s29 = scalar_select %p26, %s27, %s28
    %p32 = pneg %p26
    %p33 = scmp.eq.s32.totalorder %s17, 1
    %p34 = por %p32, %p33
    %p35 = scmp.ne.s32.totalorder %s27, %s30
    %p36 = scmp.eq.s32.totalorder %s17, 0
    %p37 = por %p35, %p36
    %p38 = scmp.ne.s32.totalorder %s27, %s30
    %p39 = scmp.eq.s32.totalorder %s22, 1
    %p40 = por %p38, %p39
    %p41 = scmp.ne.s32.totalorder %s30, %s31
    %p42 = scmp.eq.s32.totalorder %s22, 0
    %p43 = por %p41, %p42
    %p44 = scmp.ne.s32.totalorder %s30, %s31
    %p45 = scmp.eq.s32.totalorder %s23, 1
    %p46 = por %p44, %p45
    %p48 = scmp.ne.s32.totalorder %s31, %s47
    %p49 = scmp.eq.s32.totalorder %s23, 0
    %p50 = por %p48, %p49
    %s51 = ssub.s32 %s17, %s24
    %p52 = scmp.eq.s32.totalorder %s51, 0
    %s54 = sadd.s32 %s53, 1
    %s55 = scalar_select %p52, %s53, %s54
    %p58 = pneg %p52
    %p59 = scmp.eq.s32.totalorder %s17, 1
    %p60 = por %p58, %p59
    %p61 = scmp.ne.s32.totalorder %s53, %s56
    %p62 = scmp.eq.s32.totalorder %s17, 0
    %p63 = por %p61, %p62
    %p64 = scmp.ne.s32.totalorder %s53, %s56
    %p65 = scmp.eq.s32.totalorder %s22, 1
    %p66 = por %p64, %p65
    %p67 = scmp.ne.s32.totalorder %s56, %s57
    %p68 = scmp.eq.s32.totalorder %s22, 0
    %p69 = por %p67, %p68
    %p70 = scmp.ne.s32.totalorder %s56, %s57
    %p71 = scmp.eq.s32.totalorder %s23, 1
    %p72 = por %p70, %p71
    %p74 = scmp.ne.s32.totalorder %s57, %s73
    %p75 = scmp.eq.s32.totalorder %s23, 0
    %p76 = por %p74, %p75
    %s78 = sadd.s32 %s77, 1
    %p81 = scmp.eq.s32.totalorder %s17, 1
    %p82 = scmp.ne.s32.totalorder %s77, %s79
    %p83 = scmp.eq.s32.totalorder %s17, 0
    %p84 = por %p82, %p83
    %p85 = scmp.ne.s32.totalorder %s77, %s79
    %p86 = scmp.eq.s32.totalorder %s22, 1
    %p87 = por %p85, %p86
    %p88 = scmp.ne.s32.totalorder %s79, %s80
    %p89 = scmp.eq.s32.totalorder %s22, 0
    %p90 = por %p88, %p89
    %p91 = scmp.ne.s32.totalorder %s79, %s80
    %p92 = scmp.eq.s32.totalorder %s23, 1
    %p93 = por %p91, %p92
    %p95 = scmp.ne.s32.totalorder %s80, %s94
    %p96 = scmp.eq.s32.totalorder %s23, 0
    %p97 = por %p95, %p96
    %s99 = sadd.s32 %s98, 1
    %p102 = scmp.eq.s32.totalorder %s17, 1
    %p103 = scmp.ne.s32.totalorder %s98, %s100
    %p104 = scmp.eq.s32.totalorder %s17, 0
    %p105 = por %p103, %p104
    %p106 = scmp.ne.s32.totalorder %s98, %s100
    %p107 = scmp.eq.s32.totalorder %s22, 1
    %p108 = por %p106, %p107
    %p109 = scmp.ne.s32.totalorder %s100, %s101
    %p110 = scmp.eq.s32.totalorder %s22, 0
    %p111 = por %p109, %p110
    %p112 = scmp.ne.s32.totalorder %s100, %s101
    %p113 = scmp.eq.s32.totalorder %s23, 1
    %p114 = por %p112, %p113
    %p116 = scmp.ne.s32.totalorder %s101, %s115
    %p117 = scmp.eq.s32.totalorder %s23, 0
    %p118 = por %p116, %p117
    %s120 = sadd.s32 %s119, 1
    %p123 = scmp.eq.s32.totalorder %s17, 1
    %p124 = scmp.ne.s32.totalorder %s119, %s121
    %p125 = scmp.eq.s32.totalorder %s17, 0
    %p126 = por %p124, %p125
    %p127 = scmp.ne.s32.totalorder %s119, %s121
    %p128 = scmp.eq.s32.totalorder %s22, 1
    %p129 = por %p127, %p128
    %p130 = scmp.ne.s32.totalorder %s121, %s122
    %p131 = scmp.eq.s32.totalorder %s22, 0
    %p132 = por %p130, %p131
    %p133 = scmp.ne.s32.totalorder %s121, %s122
    %p134 = scmp.eq.s32.totalorder %s23, 1
    %p135 = por %p133, %p134
    %p137 = scmp.ne.s32.totalorder %s122, %s136
    %p138 = scmp.eq.s32.totalorder %s23, 0
    %p139 = por %p137, %p138
    %s141 = sadd.s32 %s140, 1
    %p144 = scmp.eq.s32.totalorder %s17, 1
    %p145 = scmp.ne.s32.totalorder %s140, %s142
    %p146 = scmp.eq.s32.totalorder %s17, 0
    %p147 = por %p145, %p146
    %p148 = scmp.ne.s32.totalorder %s140, %s142
    %p149 = scmp.eq.s32.totalorder %s22, 1
    %p150 = por %p148, %p149
    %p151 = scmp.ne.s32.totalorder %s142, %s143
    %p152 = scmp.eq.s32.totalorder %s22, 0
    %p153 = por %p151, %p152
    %p154 = scmp.ne.s32.totalorder %s142, %s143
    %p155 = scmp.eq.s32.totalorder %s23, 1
    %p156 = por %p154, %p155
    %p158 = scmp.ne.s32.totalorder %s143, %s157
    %p159 = scmp.eq.s32.totalorder %s23, 0
    %p160 = por %p158, %p159
    %s162 = sadd.s32 %s161, 1
    %p165 = scmp.eq.s32.totalorder %s17, 1
    %p166 = scmp.ne.s32.totalorder %s161, %s163
    %p167 = scmp.eq.s32.totalorder %s17, 0
    %p168 = por %p166, %p167
    %p169 = scmp.ne.s32.totalorder %s161, %s163
    %p170 = scmp.eq.s32.totalorder %s22, 1
    %p171 = por %p169, %p170
    %p172 = scmp.ne.s32.totalorder %s163, %s164
    %p173 = scmp.eq.s32.totalorder %s22, 0
    %p174 = por %p172, %p173
    %p175 = scmp.ne.s32.totalorder %s163, %s164
    %p176 = scmp.eq.s32.totalorder %s23, 1
    %p177 = por %p175, %p176
    %p179 = scmp.ne.s32.totalorder %s164, %s178
    %p180 = scmp.eq.s32.totalorder %s23, 0
    %p181 = por %p179, %p180
    %s183 = sadd.s32 %s182, 1
    %p186 = scmp.eq.s32.totalorder %s17, 1
    %p187 = scmp.ne.s32.totalorder %s182, %s184
    %p188 = scmp.eq.s32.totalorder %s17, 0
    %p189 = por %p187, %p188
    %p190 = scmp.ne.s32.totalorder %s182, %s184
    %p191 = scmp.eq.s32.totalorder %s22, 1
    %p192 = por %p190, %p191
    %p193 = scmp.ne.s32.totalorder %s184, %s185
    %p194 = scmp.eq.s32.totalorder %s22, 0
    %p195 = por %p193, %p194
    %p196 = scmp.ne.s32.totalorder %s184, %s185
    %p197 = scmp.eq.s32.totalorder %s23, 1
    %p198 = por %p196, %p197
    %p200 = scmp.ne.s32.totalorder %s185, %s199
    %p201 = scmp.eq.s32.totalorder %s23, 0
    %p202 = por %p200, %p201
    %s203 = ssub.s32 %s17, %s24
    %p204 = scmp.eq.s32.totalorder %s203, 0
    %s206 = sadd.s32 %s205, 1
    %s207 = scalar_select %p204, %s205, %s206
    %p210 = pneg %p204
    %p211 = scmp.eq.s32.totalorder %s17, 1
    %p212 = por %p210, %p211
    %p213 = scmp.ne.s32.totalorder %s205, %s208
    %p214 = scmp.eq.s32.totalorder %s17, 0
    %p215 = por %p213, %p214
    %p216 = scmp.ne.s32.totalorder %s205, %s208
    %p217 = scmp.eq.s32.totalorder %s22, 1
    %p218 = por %p216, %p217
    %p219 = scmp.ne.s32.totalorder %s208, %s209
    %p220 = scmp.eq.s32.totalorder %s22, 0
    %p221 = por %p219, %p220
    %p222 = scmp.ne.s32.totalorder %s208, %s209
    %p223 = scmp.eq.s32.totalorder %s23, 1
    %p224 = por %p222, %p223
    %p226 = scmp.ne.s32.totalorder %s209, %s225
    %p227 = scmp.eq.s32.totalorder %s23, 0
    %p228 = por %p226, %p227
    %s229 = ssub.s32 %s17, %s24
    %p230 = scmp.eq.s32.totalorder %s229, 0
    %s232 = sadd.s32 %s231, 1
    %s233 = scalar_select %p230, %s231, %s232
    %p236 = pneg %p230
    %p237 = scmp.eq.s32.totalorder %s17, 1
    %p238 = por %p236, %p237
    %p239 = scmp.ne.s32.totalorder %s231, %s234
    %p240 = scmp.eq.s32.totalorder %s17, 0
    %p241 = por %p239, %p240
    %p242 = scmp.ne.s32.totalorder %s231, %s234
    %p243 = scmp.eq.s32.totalorder %s22, 1
    %p244 = por %p242, %p243
    %p245 = scmp.ne.s32.totalorder %s234, %s235
    %p246 = scmp.eq.s32.totalorder %s22, 0
    %p247 = por %p245, %p246
    %p248 = scmp.ne.s32.totalorder %s234, %s235
    %p249 = scmp.eq.s32.totalorder %s23, 1
    %p250 = por %p248, %p249
    %p252 = scmp.ne.s32.totalorder %s235, %s251
    %p253 = scmp.eq.s32.totalorder %s23, 0
    %p254 = por %p252, %p253
    %s255 = ssub.s32 %s17, %s24
    %p256 = scmp.eq.s32.totalorder %s255, 0
    %s258 = sadd.s32 %s257, 1
    %s259 = scalar_select %p256, %s257, %s258
    %p262 = pneg %p256
    %p263 = scmp.eq.s32.totalorder %s17, 1
    %p264 = por %p262, %p263
    %p265 = scmp.ne.s32.totalorder %s257, %s260
    %p266 = scmp.eq.s32.totalorder %s17, 0
    %p267 = por %p265, %p266
    %p268 = scmp.ne.s32.totalorder %s257, %s260
    %p269 = scmp.eq.s32.totalorder %s22, 1
    %p270 = por %p268, %p269
    %p271 = scmp.ne.s32.totalorder %s260, %s261
    %p272 = scmp.eq.s32.totalorder %s22, 0
    %p273 = por %p271, %p272
    %p274 = scmp.ne.s32.totalorder %s260, %s261
    %p275 = scmp.eq.s32.totalorder %s23, 1
    %p276 = por %p274, %p275
    %p278 = scmp.ne.s32.totalorder %s261, %s277
    %p279 = scmp.eq.s32.totalorder %s23, 0
    %p280 = por %p278, %p279
    %p281 = scmp.le.s32.totalorder 1, %s17
    %p282 = scmp.lt.s32.totalorder %s17, 3
    %p283 = pnand %p281, %p282
    %p284 = pneg %p283
    // Predicated region
    $region9: #{gnn_forward.5} parent=5 // pred_check
      _
    $region10: #{gnn_forward.5} parent=5 // pred_check_branch
      %286 = sbr.rel (%p283) target = $region12
    $region11: #{gnn_forward.5} parent=5 // pred_region
      %s287 = ssub.s32 %s17, 1
      // Predicated region
      $region13: #{gnn_forward.5} parent=11 // pred_check
        %p288 = pneg %p90
      $region14: #{gnn_forward.5} parent=11 // pred_check_branch
        %290 = sbr.rel (%p288) target = $region16
      $region15: #{gnn_forward.5} parent=11 // pred_region
        _
      $region16: #{gnn_forward.5} parent=11 // pred_fallthru
        _
      // Predicated region
      $region17: #{gnn_forward.5} parent=11 // pred_check
        %p291 = pneg %p111
      $region18: #{gnn_forward.5} parent=11 // pred_check_branch
        %293 = sbr.rel (%p291) target = $region20
      $region19: #{gnn_forward.5} parent=11 // pred_region
        _
      $region20: #{gnn_forward.5} parent=11 // pred_fallthru
        _
      // Predicated region
      $region21: #{gnn_forward.5} parent=11 // pred_check
        %p294 = pneg %p132
      $region22: #{gnn_forward.5} parent=11 // pred_check_branch
        %296 = sbr.rel (%p294) target = $region24
      $region23: #{gnn_forward.5} parent=11 // pred_region
        _
      $region24: #{gnn_forward.5} parent=11 // pred_fallthru
        _
      // Predicated region
      $region25: #{gnn_forward.5} parent=11 // pred_check
        %p297 = pneg %p153
      $region26: #{gnn_forward.5} parent=11 // pred_check_branch
        %299 = sbr.rel (%p297) target = $region28
      $region27: #{gnn_forward.5} parent=11 // pred_region
        _
      $region28: #{gnn_forward.5} parent=11 // pred_fallthru
        _
      // Predicated region
      $region29: #{gnn_forward.5} parent=11 // pred_check
        %p300 = pneg %p174
      $region30: #{gnn_forward.5} parent=11 // pred_check_branch
        %302 = sbr.rel (%p300) target = $region32
      $region31: #{gnn_forward.5} parent=11 // pred_region
        _
      $region32: #{gnn_forward.5} parent=11 // pred_fallthru
        _
      // Predicated region
      $region33: #{gnn_forward.5} parent=11 // pred_check
        %p303 = pneg %p195
      $region34: #{gnn_forward.5} parent=11 // pred_check_branch
        %305 = sbr.rel (%p303) target = $region36
      $region35: #{gnn_forward.5} parent=11 // pred_region
        _
      $region36: #{gnn_forward.5} parent=11 // pred_fallthru
        _
    $region12: #{gnn_forward.5} parent=5 // pred_fallthru
      _
    %p306 = scmp.lt.s32.totalorder %s17, 2
    // Predicated region
    $region37: #{gnn_forward.5} parent=5 // pred_check
      %p307 = pneg %p306
    $region38: #{gnn_forward.5} parent=5 // pred_check_branch
      %309 = sbr.rel (%p307) target = $region40
    $region39: #{gnn_forward.5} parent=5 // pred_region
      // Predicated region
      $region41: #{gnn_forward.5} parent=39 // pred_check
        %p310 = pneg %p37
      $region42: #{gnn_forward.5} parent=39 // pred_check_branch
        %312 = sbr.rel (%p310) target = $region44
      $region43: #{gnn_forward.5} parent=39 // pred_region
        %p313 = scmp.lt.s32.totalorder %s17, 1
        %s314 = scalar_select %p313, %s17, 1
        %s315 = smul.addr %s314, 2
        %s316 = smul.addr %s315, 4
        %s317 = scalar_lea.vmem %s0, %s316
      $region44: #{gnn_forward.5} parent=39 // pred_fallthru
        _
      // Predicated region
      $region45: #{gnn_forward.5} parent=39 // pred_check
        %p318 = pneg %p63
      $region46: #{gnn_forward.5} parent=39 // pred_check_branch
        %320 = sbr.rel (%p318) target = $region48
      $region47: #{gnn_forward.5} parent=39 // pred_region
        %p321 = scmp.lt.s32.totalorder %s17, 1
        %s322 = scalar_select %p321, %s17, 1
        %s323 = smul.addr %s322, 2
        %s324 = smul.addr %s323, 4
        %s325 = scalar_lea.vmem %s1, %s324
      $region48: #{gnn_forward.5} parent=39 // pred_fallthru
        _
    $region40: #{gnn_forward.5} parent=5 // pred_fallthru
      _
    %p326 = scmp.le.s32.totalorder 1, %s17
    %p327 = scmp.lt.s32.totalorder %s17, 3
    %p328 = pnand %p326, %p327
    %p329 = pneg %p328
    // Predicated region
    $region49: #{gnn_forward.5} parent=5 // pred_check
      _
    $region50: #{gnn_forward.5} parent=5 // pred_check_branch
      %331 = sbr.rel (%p328) target = $region52
    $region51: #{gnn_forward.5} parent=5 // pred_region
      %s332 = ssub.s32 %s17, 1
      %p333 = scmp.lt.s32.totalorder %s22, 1
      %s334 = scalar_select %p333, %s22, 1
      %s335 = smul.addr %s334, 2
      %s336 = smul.addr %s335, 4
      %s337 = scalar_lea.vmem %s0, %s336
      %p338 = pneg %p43
      %p339 = pneg %p40
      %p340 = scmp.lt.s32.totalorder %s22, 1
      %s341 = scalar_select %p340, %s22, 1
      %s342 = smul.addr %s341, 2
      %s343 = smul.addr %s342, 4
      %s344 = scalar_lea.vmem %s1, %s343
      %p345 = pneg %p69
      %p346 = pneg %p66
      %p347 = pneg %p90
      %p348 = pneg %p87
      %p349 = pneg %p111
      %p350 = pneg %p108
      %p351 = pneg %p132
      %p352 = pneg %p129
      %p353 = pneg %p153
      %p354 = pneg %p150
      %p355 = pneg %p174
      %p356 = pneg %p171
      %p357 = pneg %p195
      %p358 = pneg %p192
      %p359 = pneg %p221
      %p360 = pneg %p218
      %p361 = scmp.lt.s32.totalorder %s22, 1
      %s362 = scalar_select %p361, %s22, 1
      %s363 = smul.addr %s362, 2
      %s364 = smul.addr %s363, 4
      %s365 = scalar_lea.vmem %s8, %s364
      %p366 = pneg %p247
      %p367 = pneg %p244
      %p368 = scmp.lt.s32.totalorder %s22, 1
      %s369 = scalar_select %p368, %s22, 1
      %s370 = scalar_lea.vmem %s9, %s369
      %p371 = pneg %p273
      %p372 = pneg %p270
      %p373 = scmp.lt.s32.totalorder %s22, 1
      %s374 = scalar_select %p373, %s22, 1
      %s375 = scalar_lea.vmem %s10, %s374
      %p376 = scmp.lt.s32.totalorder %s22, 1
      %s377 = scalar_select %p376, %s22, 1
      %s378 = smul.addr %s377, 2
      %s379 = smul.addr %s378, 4
      %s380 = scalar_lea.vmem %s0, %s379
      %p381 = scmp.lt.s32.totalorder %s22, 1
      %s382 = scalar_select %p381, %s22, 1
      %s383 = smul.addr %s382, 2
      %s384 = smul.addr %s383, 4
      %s385 = scalar_lea.vmem %s1, %s384
      %p386 = scmp.lt.s32.totalorder %s22, 1
      %s387 = scalar_select %p386, %s22, 1
      %s388 = smul.addr %s387, 2
      %s389 = smul.addr %s388, 4
      %s390 = scalar_lea.vmem %s8, %s389
      %p391 = scmp.lt.s32.totalorder %s22, 1
      %s392 = scalar_select %p391, %s22, 1
      %s393 = scalar_lea.vmem %s9, %s392
      %p394 = scmp.lt.s32.totalorder %s22, 1
      %s395 = scalar_select %p394, %s22, 1
      %s396 = scalar_lea.vmem %s10, %s395
      %v399 = vld [vmem:[%s380] sm:$0xf]
      %v400 = vld [vmem:[%s380 + $0x4] sm:$0xf]
      %v401 = vunpack.c.l.bf16 %v399
      %v402 = vunpack.c.l.bf16 %v400
      %v403 = vld [vmem:[%s2] sm:$0x1]
      %v405 = vperm.slane %v403, 0
      %v407 = vsub.f32 %v401, %v405
      %v408 = vsub.f32 %v402, %v405
      %v409 = vld [vmem:[%s3] sm:$0x1]
      %v411 = vperm.slane %v409, 0
      %v413 = vmul.f32 %v407, %v411
      %v414 = vmul.f32 %v408, %v411
      %v415 = vld [vmem:[%s4] sm:$0x1]
      %v417 = vperm.slane %v415, 0
      %v419 = vmul.f32 %v413, %v417
      %v420 = vmul.f32 %v414, %v417
      %v421 = vld [vmem:[%s5] sm:$0x1]
      %v423 = vperm.slane %v421, 0
      %v425 = vadd.f32 %v419, %v423
      %v426 = vadd.f32 %v420, %v423
      %v427 = vld [vmem:[%s385] sm:$0xf]
      %v428 = vld [vmem:[%s385 + $0x4] sm:$0xf]
      %v429 = vlaneseq
      %v430 = vshrl.u32 %v429, 7
      %v431 = vadd.s32 %v430, 8
      %v432 = vlaneseq
      %v433 = vand.u32 %v432, 127
      %vm434 = vcmp.eq.s32.totalorder %v430, %v433
      %vm435 = vcmp.eq.s32.totalorder %v431, %v433
      %vm436 = vmpackc.low %vm434, %vm434
      %vm437 = vmpackc.low %vm435, %vm435
      %v438 = vsel %vm436, 1065369472, %v427
      %v439 = vsel %vm437, 1065369472, %v428
      %v440 = vunpack.c.l.bf16 %v438
      %v441 = vunpack.c.l.bf16 %v439
      %vm442 = vcmask 130048
      %v443 = vsel %vm442, %v440, 0.0
      %444 = vadd.xlane.f32.xlu0 %v443
      %v445 = vpop.xlane.xlu0 %444
      %v446 = vsel %vm442, %v441, 0.0
      %447 = vadd.xlane.f32.xlu0 %v446
      %v448 = vpop.xlane.xlu0 %447
      %v449 = vmax.f32 %v445, 1.0
      %v450 = vmax.f32 %v448, 1.0
      %v451 = vrsqrt.pop %v449
      %v452 = vmul.f32 %v451, %v449
      %v453 = vmul.f32 %v452, %v451
      %v454 = vmul.f32 0.5, %v453
      %v455 = vsub.f32 1.5, %v454
      %v456 = vmul.f32 %v451, %v455
      %vm457 = vweird.f32 %v449
      %vm458 = vweird.f32 %v451
      %vm459 = vmor %vm457, %vm458
      %v460 = vsel %vm459, %v451, %v456
      %v461 = vrsqrt.pop %v450
      %v462 = vmul.f32 %v461, %v450
      %v463 = vmul.f32 %v462, %v461
      %v464 = vmul.f32 0.5, %v463
      %v465 = vsub.f32 1.5, %v464
      %v466 = vmul.f32 %v461, %v465
      %vm467 = vweird.f32 %v450
      %vm468 = vweird.f32 %v461
      %vm469 = vmor %vm467, %vm468
      %v470 = vsel %vm469, %v461, %v466
      %v471 = vpack.c.bf16 %v426, %v425
      %v472 = vld [vmem:[%s6] sm:$0xf]
      %v473 = vld [vmem:[%s6 + $0x4] sm:$0xf]
      %v474 = vld [vmem:[%s6 + $0x8] sm:$0xf]
      %v475 = vld [vmem:[%s6 + $0xc] sm:$0xf]
      %v476 = vld [vmem:[%s6 + $0x10] sm:$0xf]
      %v477 = vld [vmem:[%s6 + $0x14] sm:$0xf]
      %v478 = vld [vmem:[%s6 + $0x18] sm:$0xf]
      %v479 = vld [vmem:[%s6 + $0x1c] sm:$0xf]
      %v480 = vld [vmem:[%s6 + $0x20] sm:$0xf]
      %v481 = vld [vmem:[%s6 + $0x24] sm:$0xf]
      %v482 = vld [vmem:[%s6 + $0x28] sm:$0xf]
      %v483 = vld [vmem:[%s6 + $0x2c] sm:$0xf]
      %v484 = vld [vmem:[%s6 + $0x30] sm:$0xf]
      %v485 = vld [vmem:[%s6 + $0x34] sm:$0xf]
      %v486 = vld [vmem:[%s6 + $0x38] sm:$0xf]
      %v487 = vld [vmem:[%s6 + $0x3c] sm:$0xf]
      %v504 = vunpack.c.l.b16 %v472
      %v505 = vunpack.c.l.b16 %v473
      %v506 = vunpack.c.l.b16 %v474
      %v507 = vunpack.c.l.b16 %v475
      %v508 = vunpack.c.l.b16 %v476
      %v509 = vunpack.c.l.b16 %v477
      %v510 = vunpack.c.l.b16 %v478
      %v511 = vunpack.c.l.b16 %v479
      %v512 = vunpack.c.l.b16 %v480
      %v513 = vunpack.c.l.b16 %v481
      %v514 = vunpack.c.l.b16 %v482
      %v515 = vunpack.c.l.b16 %v483
      %v516 = vunpack.c.l.b16 %v484
      %v517 = vunpack.c.l.b16 %v485
      %v518 = vunpack.c.l.b16 %v486
      %v519 = vunpack.c.l.b16 %v487
      %v520 = vpack.c.b16 %v505, %v504
      %v521 = vpack.c.b16 %v507, %v506
      %v522 = vpack.c.b16 %v509, %v508
      %v523 = vpack.c.b16 %v511, %v510
      %v524 = vpack.c.b16 %v513, %v512
      %v525 = vpack.c.b16 %v515, %v514
      %v526 = vpack.c.b16 %v517, %v516
      %v527 = vpack.c.b16 %v519, %v518
      %536 = vmatpush.bf16.msra.mxu0 %v527
      %537 = vmatpush.bf16.msra.mxu0 %v526
      %538 = vmatpush.bf16.msra.mxu0 %v525
      %539 = vmatpush.bf16.msra.mxu0 %v524
      %540 = vmatpush.bf16.msra.mxu0 %v523
      %541 = vmatpush.bf16.msra.mxu0 %v522
      %542 = vmatpush.bf16.msra.mxu0 %v521
      %543 = vmatpush.bf16.msra.mxu0 %v520
      %544 = vmatmul.bf16.gmra.mxu0 %v471
      %v545 = vpop.f32.mrf.mxu0
      %v546 = vadd.f32 0.0, %v545
      %v547 = vpop.f32.mrf.mxu0
      %v548 = vadd.f32 0.0, %v547
      %549 = vdwg.mxu0
      %v550 = vmul.f32 %v546, %v460
      %v551 = vmul.f32 %v548, %v470
      %v552 = vpack.c.bf16 %v551, %v550
      %v555 = vunpack.c.l.b16 %v438
      %v556 = vunpack.c.l.b16 %v439
      %v557 = vpack.c.b16 %v556, %v555
      %v559 = vsel %vm442, %v557, 0
      %561 = vmatpush.bf16.msra.mxu0 0
      %562 = vmatpush.bf16.msra.mxu0 0
      %563 = vmatpush.bf16.msra.mxu0 0
      %564 = vmatpush.bf16.msra.mxu0 0
      %565 = vmatpush.bf16.msra.mxu0 0
      %566 = vmatpush.bf16.msra.mxu0 0
      %567 = vmatpush.bf16.msra.mxu0 0
      %568 = vmatpush.bf16.msra.mxu0 %v552
      %569 = vmatmul.bf16.gmra.mxu0 %v559
      %v570 = vpop.f32.mrf.mxu0
      %v571 = vadd.f32 0.0, %v570
      %v572 = vpop.f32.mrf.mxu0
      %v573 = vadd.f32 0.0, %v572
      %574 = vdwg.mxu0
      %v575 = vmul.f32 %v571, %v460
      %v576 = vmul.f32 %v573, %v470
      %v577 = vld [vmem:[%s7] sm:$0x1]
      %v579 = vperm.slane %v577, 0
      %v581 = vadd.f32 %v575, %v579
      %v582 = vadd.f32 %v576, %v579
      %v583 = vmax.f32 %v581, 0.0
      %v584 = vmax.f32 %v582, 0.0
      %v585 = vadd.f32 %v583, %v584
      %v586 = vrot.slane %v585, 4
      %v587 = vadd.f32 %v585, %v586
      %v588 = vrot.slane %v587, 2
      %v589 = vadd.f32 %v587, %v588
      %v590 = vrot.slane %v589, 1
      %v591 = vadd.f32 %v589, %v590
      %v592 = vrcp.pop 16.0
      %v593 = vmul.f32 16.0, %v592
      %v594 = vsub.f32 1.0, %v593
      %v595 = vmul.f32 %v592, %v594
      %v596 = vadd.f32 %v592, %v595
      %vm597 = vweird.f32 %v592
      %v598 = vsel %vm597, %v592, %v596
      %v599 = vmul.f32 %v591, %v598
      %v600 = vsub.f32 %v583, %v599
      %v601 = vsub.f32 %v584, %v599
      %602 = vst [vmem:[%s393] sm:$0x1] %v599
      %v603 = vmul.f32 %v600, %v600
      %v604 = vmul.f32 %v601, %v601
      %v605 = vadd.f32 %v603, %v604
      %v606 = vrot.slane %v605, 4
      %v607 = vadd.f32 %v605, %v606
      %v608 = vrot.slane %v607, 2
      %v609 = vadd.f32 %v607, %v608
      %v610 = vrot.slane %v609, 1
      %v611 = vadd.f32 %v609, %v610
      %612 = vst [vmem:[%s396] sm:$0x1] %v611
      %v613 = vpack.c.bf16 %v583, %v583
      %v614 = vpack.c.bf16 %v584, %v584
      %615 = vst [vmem:[%s390] sm:$0xf] %v613
      %616 = vst [vmem:[%s390 + $0x4] sm:$0xf] %v614
      %p617 = scmp.lt.s32.totalorder %s22, 1
      %s618 = scalar_select %p617, %s22, 1
      %s619 = smul.addr %s618, 2
      %s620 = smul.addr %s619, 4
      %s621 = scalar_lea.vmem %s8, %s620
      %p622 = scmp.lt.s32.totalorder %s22, 1
      %s623 = scalar_select %p622, %s22, 1
      %s624 = scalar_lea.vmem %s9, %s623
      %p625 = scmp.lt.s32.totalorder %s22, 1
      %s626 = scalar_select %p625, %s22, 1
      %s627 = scalar_lea.vmem %s10, %s626
      // Predicated region
      $region53: #{gnn_forward.5} parent=51 // pred_check
        %p628 = pneg %p218
      $region54: #{gnn_forward.5} parent=51 // pred_check_branch
        %630 = sbr.rel (%p628) target = $region56
      $region55: #{gnn_forward.5} parent=51 // pred_region
        _
      $region56: #{gnn_forward.5} parent=51 // pred_fallthru
        _
      // Predicated region
      $region57: #{gnn_forward.5} parent=51 // pred_check
        %p631 = pneg %p244
      $region58: #{gnn_forward.5} parent=51 // pred_check_branch
        %633 = sbr.rel (%p631) target = $region60
      $region59: #{gnn_forward.5} parent=51 // pred_region
        _
      $region60: #{gnn_forward.5} parent=51 // pred_fallthru
        _
      // Predicated region
      $region61: #{gnn_forward.5} parent=51 // pred_check
        %p634 = pneg %p270
      $region62: #{gnn_forward.5} parent=51 // pred_check_branch
        %636 = sbr.rel (%p634) target = $region64
      $region63: #{gnn_forward.5} parent=51 // pred_region
        _
      $region64: #{gnn_forward.5} parent=51 // pred_fallthru
        _
    $region52: #{gnn_forward.5} parent=5 // pred_fallthru
      _
    %p637 = scmp.le.s32.totalorder 2, %s17
    // Predicated region
    $region65: #{gnn_forward.5} parent=5 // pred_check
      %p638 = pneg %p637
    $region66: #{gnn_forward.5} parent=5 // pred_check_branch
      %640 = sbr.rel (%p638) target = $region68
    $region67: #{gnn_forward.5} parent=5 // pred_region
      %s641 = ssub.s32 %s17, 2
      // Predicated region
      $region69: #{gnn_forward.5} parent=67 // pred_check
        %p642 = pneg %p224
      $region70: #{gnn_forward.5} parent=67 // pred_check_branch
        %644 = sbr.rel (%p642) target = $region72
      $region71: #{gnn_forward.5} parent=67 // pred_region
        %p645 = scmp.lt.s32.totalorder %s23, 1
        %s646 = scalar_select %p645, %s23, 1
        %s647 = smul.addr %s646, 2
        %s648 = smul.addr %s647, 4
        %s649 = scalar_lea.vmem %s8, %s648
      $region72: #{gnn_forward.5} parent=67 // pred_fallthru
        _
      // Predicated region
      $region73: #{gnn_forward.5} parent=67 // pred_check
        %p650 = pneg %p250
      $region74: #{gnn_forward.5} parent=67 // pred_check_branch
        %652 = sbr.rel (%p650) target = $region76
      $region75: #{gnn_forward.5} parent=67 // pred_region
        %p653 = scmp.lt.s32.totalorder %s23, 1
        %s654 = scalar_select %p653, %s23, 1
        %s655 = scalar_lea.vmem %s9, %s654
      $region76: #{gnn_forward.5} parent=67 // pred_fallthru
        _
      // Predicated region
      $region77: #{gnn_forward.5} parent=67 // pred_check
        %p656 = pneg %p276
      $region78: #{gnn_forward.5} parent=67 // pred_check_branch
        %658 = sbr.rel (%p656) target = $region80
      $region79: #{gnn_forward.5} parent=67 // pred_region
        %p659 = scmp.lt.s32.totalorder %s23, 1
        %s660 = scalar_select %p659, %s23, 1
        %s661 = scalar_lea.vmem %s10, %s660
      $region80: #{gnn_forward.5} parent=67 // pred_fallthru
        _
    $region68: #{gnn_forward.5} parent=5 // pred_fallthru
      _
  $region6: #{gnn_forward.5} parent=0 // loop_footer
    %s21 = sadd.s32 1, %s17
  $region7: #{gnn_forward.5} parent=0 // loop_footer_branch
    %16 = sbr.rel target = $region3
  $region8: #{gnn_forward.5} parent=0 // loop_exit
    _

// kernel: gnn_forward.7
$region0: #{gnn_forward.7}
  #allocation0 [shape = 'u32[]', space=smem, size = 0x4, offset = 0x4, fixed_abs, tag = 'smem constant byte address 0x4 - core index']
  #allocation1 [shape = 'u32[72,128]{1,0:T(1,128)}', space=vmem, size = 0x9000, scoped, tag = 'internal scratch']
  %s0 = inlined_call_operand.vmem [shape: bf16[2,16,128], index: 0, kind: input, shape index: {}]
  %s1 = inlined_call_operand.vmem [shape: bf16[2,16,128], index: 1, kind: input, shape index: {}]
  %s2 = inlined_call_operand.vmem [shape: bf16[2,16,128], index: 2, kind: input, shape index: {}]
  %s3 = inlined_call_operand.vmem [shape: f32[1,128], index: 3, kind: input, shape index: {}]
  %s4 = inlined_call_operand.vmem [shape: f32[1,128], index: 4, kind: input, shape index: {}]
  %s5 = inlined_call_operand.vmem [shape: f32[1,128], index: 5, kind: input, shape index: {}]
  %s6 = inlined_call_operand.vmem [shape: f32[1,128], index: 6, kind: input, shape index: {}]
  %s7 = inlined_call_operand.vmem [shape: f32[1,128], index: 7, kind: input, shape index: {}]
  %s8 = inlined_call_operand.vmem [shape: f32[1,128], index: 8, kind: input, shape index: {}]
  %s9 = inlined_call_operand.vmem [shape: f32[1,128], index: 9, kind: input, shape index: {}]
  %s10 = inlined_call_operand.vmem [shape: f32[1,128], index: 10, kind: input, shape index: {}]
  %s11 = inlined_call_operand.vmem [shape: f32[1,128], index: 11, kind: input, shape index: {}]
  %s12 = inlined_call_operand.vmem [shape: f32[1,128], index: 12, kind: input, shape index: {}]
  %s13 = inlined_call_operand.vmem [shape: f32[1,128], index: 13, kind: input, shape index: {}]
  %s14 = inlined_call_operand.vmem [shape: f32[1,128], index: 14, kind: input, shape index: {}]
  %s15 = inlined_call_operand.vmem [shape: bf16[384,128], index: 15, kind: input, shape index: {}]
  %s16 = inlined_call_operand.vmem [shape: f32[1,128], index: 16, kind: input, shape index: {}]
  %s17 = inlined_call_operand.hbm [shape: f32[2,16,128], index: 17, kind: output, shape index: {}]
  %s18 = sld [smem:[#allocation0]]
  $region101: #{gnn_forward.7} parent=0
    _
  %s20 = ssub.s32 1, %s18
  %s21 = scalar_select 0, %s20, %s18
  $region1: #{gnn_forward.7} parent=0
    #allocation2 [shape = 'u8[16384]{0}', space=vmem, size = 0x4000, scoped, tag = 'output window, operand 0']
    #allocation3 [shape = 's32[2]{0}', space=sflag, size = 0x8, scoped, tag = 'scoped memory for gnn_forward.7']
    %22 = vsyncpa [#allocation3], 0
    %s23 = scalar_lea.sflag [#allocation3], 1
    %24 = vsyncpa %s23, 0
    loop: start=0, step=1, limit=4
    $region2: #{gnn_forward.7} parent=1 // loop_pre_header
      _
    $region3: #{gnn_forward.7} parent=1 // loop_header
      %s26 = sphi 0, %s30
      %p27 = scmp.ge.s32.totalorder %s26, 4
      %s36 = sphi 0, %s38
      %s39 = sphi 0, %s36
      %s40 = sphi 0, %s39
      %s56 = sphi 0, %s40
      %s62 = sphi 0, %s64
      %s65 = sphi 0, %s62
      %s66 = sphi 0, %s65
      %s82 = sphi 0, %s66
      %s88 = sphi 0, %s90
      %s91 = sphi 0, %s88
      %s92 = sphi 0, %s91
      %s108 = sphi 0, %s92
      %s112 = sphi 0, %s112
      %s114 = sphi 0, %s112
      %s115 = sphi 0, %s114
      %s129 = sphi 0, %s115
      %s133 = sphi 0, %s133
      %s135 = sphi 0, %s133
      %s136 = sphi 0, %s135
      %s150 = sphi 0, %s136
      %s154 = sphi 0, %s154
      %s156 = sphi 0, %s154
      %s157 = sphi 0, %s156
      %s171 = sphi 0, %s157
      %s175 = sphi 0, %s175
      %s177 = sphi 0, %s175
      %s178 = sphi 0, %s177
      %s192 = sphi 0, %s178
      %s196 = sphi 0, %s196
      %s198 = sphi 0, %s196
      %s199 = sphi 0, %s198
      %s213 = sphi 0, %s199
      %s217 = sphi 0, %s217
      %s219 = sphi 0, %s217
      %s220 = sphi 0, %s219
      %s234 = sphi 0, %s220
      %s238 = sphi 0, %s238
      %s240 = sphi 0, %s238
      %s241 = sphi 0, %s240
      %s255 = sphi 0, %s241
      %s259 = sphi 0, %s259
      %s261 = sphi 0, %s259
      %s262 = sphi 0, %s261
      %s276 = sphi 0, %s262
      %s280 = sphi 0, %s280
      %s282 = sphi 0, %s280
      %s283 = sphi 0, %s282
      %s297 = sphi 0, %s283
      %s301 = sphi 0, %s301
      %s303 = sphi 0, %s301
      %s304 = sphi 0, %s303
      %s318 = sphi 0, %s304
      %s322 = sphi 0, %s322
      %s324 = sphi 0, %s322
      %s325 = sphi 0, %s324
      %s339 = sphi 0, %s325
      %s343 = sphi 0, %s343
      %s345 = sphi 0, %s343
      %s346 = sphi 0, %s345
      %s360 = sphi 0, %s346
      %s364 = sphi 0, %s364
      %s366 = sphi 0, %s364
      %s367 = sphi 0, %s366
      %s381 = sphi 0, %s367
      %s385 = sphi 0, %s385
      %s387 = sphi 0, %s385
      %s388 = sphi 0, %s387
      %s402 = sphi 0, %s388
      %s408 = sphi 0, %s410
      %s411 = sphi 0, %s408
      %s412 = sphi 0, %s411
      %s428 = sphi 0, %s412
    $region4: #{gnn_forward.7} parent=1 // loop_header_branch
      %29 = sbr.rel (%p27) target = $region8
    $region5: #{gnn_forward.7} parent=1 // loop_body
      %s31 = ssub.s32 %s26, 1
      %s32 = ssub.s32 %s26, 2
      %s33 = sadd.s32 %s26, 1
      %s34 = ssub.s32 %s26, %s33
      %p35 = scmp.eq.s32.totalorder %s34, 0
      %s37 = sadd.s32 %s36, 1
      %s38 = scalar_select %p35, %s36, %s37
      %p41 = pneg %p35
      %p42 = scmp.eq.s32.totalorder %s26, 1
      %p43 = por %p41, %p42
      %p44 = scmp.ne.s32.totalorder %s36, %s39
      %p45 = scmp.eq.s32.totalorder %s26, 0
      %p46 = por %p44, %p45
      %p47 = scmp.ne.s32.totalorder %s36, %s39
      %p48 = scmp.eq.s32.totalorder %s31, 1
      %p49 = por %p47, %p48
      %p50 = scmp.ne.s32.totalorder %s39, %s40
      %p51 = scmp.eq.s32.totalorder %s31, 0
      %p52 = por %p50, %p51
      %p53 = scmp.ne.s32.totalorder %s39, %s40
      %p54 = scmp.eq.s32.totalorder %s32, 1
      %p55 = por %p53, %p54
      %p57 = scmp.ne.s32.totalorder %s40, %s56
      %p58 = scmp.eq.s32.totalorder %s32, 0
      %p59 = por %p57, %p58
      %s60 = ssub.s32 %s26, %s33
      %p61 = scmp.eq.s32.totalorder %s60, 0
      %s63 = sadd.s32 %s62, 1
      %s64 = scalar_select %p61, %s62, %s63
      %p67 = pneg %p61
      %p68 = scmp.eq.s32.totalorder %s26, 1
      %p69 = por %p67, %p68
      %p70 = scmp.ne.s32.totalorder %s62, %s65
      %p71 = scmp.eq.s32.totalorder %s26, 0
      %p72 = por %p70, %p71
      %p73 = scmp.ne.s32.totalorder %s62, %s65
      %p74 = scmp.eq.s32.totalorder %s31, 1
      %p75 = por %p73, %p74
      %p76 = scmp.ne.s32.totalorder %s65, %s66
      %p77 = scmp.eq.s32.totalorder %s31, 0
      %p78 = por %p76, %p77
      %p79 = scmp.ne.s32.totalorder %s65, %s66
      %p80 = scmp.eq.s32.totalorder %s32, 1
      %p81 = por %p79, %p80
      %p83 = scmp.ne.s32.totalorder %s66, %s82
      %p84 = scmp.eq.s32.totalorder %s32, 0
      %p85 = por %p83, %p84
      %s86 = ssub.s32 %s26, %s33
      %p87 = scmp.eq.s32.totalorder %s86, 0
      %s89 = sadd.s32 %s88, 1
      %s90 = scalar_select %p87, %s88, %s89
      %p93 = pneg %p87
      %p94 = scmp.eq.s32.totalorder %s26, 1
      %p95 = por %p93, %p94
      %p96 = scmp.ne.s32.totalorder %s88, %s91
      %p97 = scmp.eq.s32.totalorder %s26, 0
      %p98 = por %p96, %p97
      %p99 = scmp.ne.s32.totalorder %s88, %s91
      %p100 = scmp.eq.s32.totalorder %s31, 1
      %p101 = por %p99, %p100
      %p102 = scmp.ne.s32.totalorder %s91, %s92
      %p103 = scmp.eq.s32.totalorder %s31, 0
      %p104 = por %p102, %p103
      %p105 = scmp.ne.s32.totalorder %s91, %s92
      %p106 = scmp.eq.s32.totalorder %s32, 1
      %p107 = por %p105, %p106
      %p109 = scmp.ne.s32.totalorder %s92, %s108
      %p110 = scmp.eq.s32.totalorder %s32, 0
      %p111 = por %p109, %p110
      %s113 = sadd.s32 %s112, 1
      %p116 = scmp.eq.s32.totalorder %s26, 1
      %p117 = scmp.ne.s32.totalorder %s112, %s114
      %p118 = scmp.eq.s32.totalorder %s26, 0
      %p119 = por %p117, %p118
      %p120 = scmp.ne.s32.totalorder %s112, %s114
      %p121 = scmp.eq.s32.totalorder %s31, 1
      %p122 = por %p120, %p121
      %p123 = scmp.ne.s32.totalorder %s114, %s115
      %p124 = scmp.eq.s32.totalorder %s31, 0
      %p125 = por %p123, %p124
      %p126 = scmp.ne.s32.totalorder %s114, %s115
      %p127 = scmp.eq.s32.totalorder %s32, 1
      %p128 = por %p126, %p127
      %p130 = scmp.ne.s32.totalorder %s115, %s129
      %p131 = scmp.eq.s32.totalorder %s32, 0
      %p132 = por %p130, %p131
      %s134 = sadd.s32 %s133, 1
      %p137 = scmp.eq.s32.totalorder %s26, 1
      %p138 = scmp.ne.s32.totalorder %s133, %s135
      %p139 = scmp.eq.s32.totalorder %s26, 0
      %p140 = por %p138, %p139
      %p141 = scmp.ne.s32.totalorder %s133, %s135
      %p142 = scmp.eq.s32.totalorder %s31, 1
      %p143 = por %p141, %p142
      %p144 = scmp.ne.s32.totalorder %s135, %s136
      %p145 = scmp.eq.s32.totalorder %s31, 0
      %p146 = por %p144, %p145
      %p147 = scmp.ne.s32.totalorder %s135, %s136
      %p148 = scmp.eq.s32.totalorder %s32, 1
      %p149 = por %p147, %p148
      %p151 = scmp.ne.s32.totalorder %s136, %s150
      %p152 = scmp.eq.s32.totalorder %s32, 0
      %p153 = por %p151, %p152
      %s155 = sadd.s32 %s154, 1
      %p158 = scmp.eq.s32.totalorder %s26, 1
      %p159 = scmp.ne.s32.totalorder %s154, %s156
      %p160 = scmp.eq.s32.totalorder %s26, 0
      %p161 = por %p159, %p160
      %p162 = scmp.ne.s32.totalorder %s154, %s156
      %p163 = scmp.eq.s32.totalorder %s31, 1
      %p164 = por %p162, %p163
      %p165 = scmp.ne.s32.totalorder %s156, %s157
      %p166 = scmp.eq.s32.totalorder %s31, 0
      %p167 = por %p165, %p166
      %p168 = scmp.ne.s32.totalorder %s156, %s157
      %p169 = scmp.eq.s32.totalorder %s32, 1
      %p170 = por %p168, %p169
      %p172 = scmp.ne.s32.totalorder %s157, %s171
      %p173 = scmp.eq.s32.totalorder %s32, 0
      %p174 = por %p172, %p173
      %s176 = sadd.s32 %s175, 1
      %p179 = scmp.eq.s32.totalorder %s26, 1
      %p180 = scmp.ne.s32.totalorder %s175, %s177
      %p181 = scmp.eq.s32.totalorder %s26, 0
      %p182 = por %p180, %p181
      %p183 = scmp.ne.s32.totalorder %s175, %s177
      %p184 = scmp.eq.s32.totalorder %s31, 1
      %p185 = por %p183, %p184
      %p186 = scmp.ne.s32.totalorder %s177, %s178
      %p187 = scmp.eq.s32.totalorder %s31, 0
      %p188 = por %p186, %p187
      %p189 = scmp.ne.s32.totalorder %s177, %s178
      %p190 = scmp.eq.s32.totalorder %s32, 1
      %p191 = por %p189, %p190
      %p193 = scmp.ne.s32.totalorder %s178, %s192
      %p194 = scmp.eq.s32.totalorder %s32, 0
      %p195 = por %p193, %p194
      %s197 = sadd.s32 %s196, 1
      %p200 = scmp.eq.s32.totalorder %s26, 1
      %p201 = scmp.ne.s32.totalorder %s196, %s198
      %p202 = scmp.eq.s32.totalorder %s26, 0
      %p203 = por %p201, %p202
      %p204 = scmp.ne.s32.totalorder %s196, %s198
      %p205 = scmp.eq.s32.totalorder %s31, 1
      %p206 = por %p204, %p205
      %p207 = scmp.ne.s32.totalorder %s198, %s199
      %p208 = scmp.eq.s32.totalorder %s31, 0
      %p209 = por %p207, %p208
      %p210 = scmp.ne.s32.totalorder %s198, %s199
      %p211 = scmp.eq.s32.totalorder %s32, 1
      %p212 = por %p210, %p211
      %p214 = scmp.ne.s32.totalorder %s199, %s213
      %p215 = scmp.eq.s32.totalorder %s32, 0
      %p216 = por %p214, %p215
      %s218 = sadd.s32 %s217, 1
      %p221 = scmp.eq.s32.totalorder %s26, 1
      %p222 = scmp.ne.s32.totalorder %s217, %s219
      %p223 = scmp.eq.s32.totalorder %s26, 0
      %p224 = por %p222, %p223
      %p225 = scmp.ne.s32.totalorder %s217, %s219
      %p226 = scmp.eq.s32.totalorder %s31, 1
      %p227 = por %p225, %p226
      %p228 = scmp.ne.s32.totalorder %s219, %s220
      %p229 = scmp.eq.s32.totalorder %s31, 0
      %p230 = por %p228, %p229
      %p231 = scmp.ne.s32.totalorder %s219, %s220
      %p232 = scmp.eq.s32.totalorder %s32, 1
      %p233 = por %p231, %p232
      %p235 = scmp.ne.s32.totalorder %s220, %s234
      %p236 = scmp.eq.s32.totalorder %s32, 0
      %p237 = por %p235, %p236
      %s239 = sadd.s32 %s238, 1
      %p242 = scmp.eq.s32.totalorder %s26, 1
      %p243 = scmp.ne.s32.totalorder %s238, %s240
      %p244 = scmp.eq.s32.totalorder %s26, 0
      %p245 = por %p243, %p244
      %p246 = scmp.ne.s32.totalorder %s238, %s240
      %p247 = scmp.eq.s32.totalorder %s31, 1
      %p248 = por %p246, %p247
      %p249 = scmp.ne.s32.totalorder %s240, %s241
      %p250 = scmp.eq.s32.totalorder %s31, 0
      %p251 = por %p249, %p250
      %p252 = scmp.ne.s32.totalorder %s240, %s241
      %p253 = scmp.eq.s32.totalorder %s32, 1
      %p254 = por %p252, %p253
      %p256 = scmp.ne.s32.totalorder %s241, %s255
      %p257 = scmp.eq.s32.totalorder %s32, 0
      %p258 = por %p256, %p257
      %s260 = sadd.s32 %s259, 1
      %p263 = scmp.eq.s32.totalorder %s26, 1
      %p264 = scmp.ne.s32.totalorder %s259, %s261
      %p265 = scmp.eq.s32.totalorder %s26, 0
      %p266 = por %p264, %p265
      %p267 = scmp.ne.s32.totalorder %s259, %s261
      %p268 = scmp.eq.s32.totalorder %s31, 1
      %p269 = por %p267, %p268
      %p270 = scmp.ne.s32.totalorder %s261, %s262
      %p271 = scmp.eq.s32.totalorder %s31, 0
      %p272 = por %p270, %p271
      %p273 = scmp.ne.s32.totalorder %s261, %s262
      %p274 = scmp.eq.s32.totalorder %s32, 1
      %p275 = por %p273, %p274
      %p277 = scmp.ne.s32.totalorder %s262, %s276
      %p278 = scmp.eq.s32.totalorder %s32, 0
      %p279 = por %p277, %p278
      %s281 = sadd.s32 %s280, 1
      %p284 = scmp.eq.s32.totalorder %s26, 1
      %p285 = scmp.ne.s32.totalorder %s280, %s282
      %p286 = scmp.eq.s32.totalorder %s26, 0
      %p287 = por %p285, %p286
      %p288 = scmp.ne.s32.totalorder %s280, %s282
      %p289 = scmp.eq.s32.totalorder %s31, 1
      %p290 = por %p288, %p289
      %p291 = scmp.ne.s32.totalorder %s282, %s283
      %p292 = scmp.eq.s32.totalorder %s31, 0
      %p293 = por %p291, %p292
      %p294 = scmp.ne.s32.totalorder %s282, %s283
      %p295 = scmp.eq.s32.totalorder %s32, 1
      %p296 = por %p294, %p295
      %p298 = scmp.ne.s32.totalorder %s283, %s297
      %p299 = scmp.eq.s32.totalorder %s32, 0
      %p300 = por %p298, %p299
      %s302 = sadd.s32 %s301, 1
      %p305 = scmp.eq.s32.totalorder %s26, 1
      %p306 = scmp.ne.s32.totalorder %s301, %s303
      %p307 = scmp.eq.s32.totalorder %s26, 0
      %p308 = por %p306, %p307
      %p309 = scmp.ne.s32.totalorder %s301, %s303
      %p310 = scmp.eq.s32.totalorder %s31, 1
      %p311 = por %p309, %p310
      %p312 = scmp.ne.s32.totalorder %s303, %s304
      %p313 = scmp.eq.s32.totalorder %s31, 0
      %p314 = por %p312, %p313
      %p315 = scmp.ne.s32.totalorder %s303, %s304
      %p316 = scmp.eq.s32.totalorder %s32, 1
      %p317 = por %p315, %p316
      %p319 = scmp.ne.s32.totalorder %s304, %s318
      %p320 = scmp.eq.s32.totalorder %s32, 0
      %p321 = por %p319, %p320
      %s323 = sadd.s32 %s322, 1
      %p326 = scmp.eq.s32.totalorder %s26, 1
      %p327 = scmp.ne.s32.totalorder %s322, %s324
      %p328 = scmp.eq.s32.totalorder %s26, 0
      %p329 = por %p327, %p328
      %p330 = scmp.ne.s32.totalorder %s322, %s324
      %p331 = scmp.eq.s32.totalorder %s31, 1
      %p332 = por %p330, %p331
      %p333 = scmp.ne.s32.totalorder %s324, %s325
      %p334 = scmp.eq.s32.totalorder %s31, 0
      %p335 = por %p333, %p334
      %p336 = scmp.ne.s32.totalorder %s324, %s325
      %p337 = scmp.eq.s32.totalorder %s32, 1
      %p338 = por %p336, %p337
      %p340 = scmp.ne.s32.totalorder %s325, %s339
      %p341 = scmp.eq.s32.totalorder %s32, 0
      %p342 = por %p340, %p341
      %s344 = sadd.s32 %s343, 1
      %p347 = scmp.eq.s32.totalorder %s26, 1
      %p348 = scmp.ne.s32.totalorder %s343, %s345
      %p349 = scmp.eq.s32.totalorder %s26, 0
      %p350 = por %p348, %p349
      %p351 = scmp.ne.s32.totalorder %s343, %s345
      %p352 = scmp.eq.s32.totalorder %s31, 1
      %p353 = por %p351, %p352
      %p354 = scmp.ne.s32.totalorder %s345, %s346
      %p355 = scmp.eq.s32.totalorder %s31, 0
      %p356 = por %p354, %p355
      %p357 = scmp.ne.s32.totalorder %s345, %s346
      %p358 = scmp.eq.s32.totalorder %s32, 1
      %p359 = por %p357, %p358
      %p361 = scmp.ne.s32.totalorder %s346, %s360
      %p362 = scmp.eq.s32.totalorder %s32, 0
      %p363 = por %p361, %p362
      %s365 = sadd.s32 %s364, 1
      %p368 = scmp.eq.s32.totalorder %s26, 1
      %p369 = scmp.ne.s32.totalorder %s364, %s366
      %p370 = scmp.eq.s32.totalorder %s26, 0
      %p371 = por %p369, %p370
      %p372 = scmp.ne.s32.totalorder %s364, %s366
      %p373 = scmp.eq.s32.totalorder %s31, 1
      %p374 = por %p372, %p373
      %p375 = scmp.ne.s32.totalorder %s366, %s367
      %p376 = scmp.eq.s32.totalorder %s31, 0
      %p377 = por %p375, %p376
      %p378 = scmp.ne.s32.totalorder %s366, %s367
      %p379 = scmp.eq.s32.totalorder %s32, 1
      %p380 = por %p378, %p379
      %p382 = scmp.ne.s32.totalorder %s367, %s381
      %p383 = scmp.eq.s32.totalorder %s32, 0
      %p384 = por %p382, %p383
      %s386 = sadd.s32 %s385, 1
      %p389 = scmp.eq.s32.totalorder %s26, 1
      %p390 = scmp.ne.s32.totalorder %s385, %s387
      %p391 = scmp.eq.s32.totalorder %s26, 0
      %p392 = por %p390, %p391
      %p393 = scmp.ne.s32.totalorder %s385, %s387
      %p394 = scmp.eq.s32.totalorder %s31, 1
      %p395 = por %p393, %p394
      %p396 = scmp.ne.s32.totalorder %s387, %s388
      %p397 = scmp.eq.s32.totalorder %s31, 0
      %p398 = por %p396, %p397
      %p399 = scmp.ne.s32.totalorder %s387, %s388
      %p400 = scmp.eq.s32.totalorder %s32, 1
      %p401 = por %p399, %p400
      %p403 = scmp.ne.s32.totalorder %s388, %s402
      %p404 = scmp.eq.s32.totalorder %s32, 0
      %p405 = por %p403, %p404
      %s406 = ssub.s32 %s26, %s33
      %p407 = scmp.eq.s32.totalorder %s406, 0
      %s409 = sadd.s32 %s408, 1
      %s410 = scalar_select %p407, %s408, %s409
      %p413 = pneg %p407
      %p414 = scmp.eq.s32.totalorder %s26, 1
      %p415 = por %p413, %p414
      %p416 = scmp.ne.s32.totalorder %s408, %s411
      %p417 = scmp.eq.s32.totalorder %s26, 0
      %p418 = por %p416, %p417
      %p419 = scmp.ne.s32.totalorder %s408, %s411
      %p420 = scmp.eq.s32.totalorder %s31, 1
      %p421 = por %p419, %p420
      %p422 = scmp.ne.s32.totalorder %s411, %s412
      %p423 = scmp.eq.s32.totalorder %s31, 0
      %p424 = por %p422, %p423
      %p425 = scmp.ne.s32.totalorder %s411, %s412
      %p426 = scmp.eq.s32.totalorder %s32, 1
      %p427 = por %p425, %p426
      %p429 = scmp.ne.s32.totalorder %s412, %s428
      %p430 = scmp.eq.s32.totalorder %s32, 0
      %p431 = por %p429, %p430
      %p432 = scmp.le.s32.totalorder 1, %s26
      %p433 = scmp.lt.s32.totalorder %s26, 3
      %p434 = pnand %p432, %p433
      %p435 = pneg %p434
      // Predicated region
      $region9: #{gnn_forward.7} parent=5 // pred_check
        _
      $region10: #{gnn_forward.7} parent=5 // pred_check_branch
        %437 = sbr.rel (%p434) target = $region12
      $region11: #{gnn_forward.7} parent=5 // pred_region
        %s438 = ssub.s32 %s26, 1
        // Predicated region
        $region13: #{gnn_forward.7} parent=11 // pred_check
          %p439 = pneg %p125
        $region14: #{gnn_forward.7} parent=11 // pred_check_branch
          %441 = sbr.rel (%p439) target = $region16
        $region15: #{gnn_forward.7} parent=11 // pred_region
          _
        $region16: #{gnn_forward.7} parent=11 // pred_fallthru
          _
        // Predicated region
        $region17: #{gnn_forward.7} parent=11 // pred_check
          %p442 = pneg %p146
        $region18: #{gnn_forward.7} parent=11 // pred_check_branch
          %444 = sbr.rel (%p442) target = $region20
        $region19: #{gnn_forward.7} parent=11 // pred_region
          _
        $region20: #{gnn_forward.7} parent=11 // pred_fallthru
          _
        // Predicated region
        $region21: #{gnn_forward.7} parent=11 // pred_check
          %p445 = pneg %p167
        $region22: #{gnn_forward.7} parent=11 // pred_check_branch
          %447 = sbr.rel (%p445) target = $region24
        $region23: #{gnn_forward.7} parent=11 // pred_region
          _
        $region24: #{gnn_forward.7} parent=11 // pred_fallthru
          _
        // Predicated region
        $region25: #{gnn_forward.7} parent=11 // pred_check
          %p448 = pneg %p188
        $region26: #{gnn_forward.7} parent=11 // pred_check_branch
          %450 = sbr.rel (%p448) target = $region28
        $region27: #{gnn_forward.7} parent=11 // pred_region
          _
        $region28: #{gnn_forward.7} parent=11 // pred_fallthru
          _
        // Predicated region
        $region29: #{gnn_forward.7} parent=11 // pred_check
          %p451 = pneg %p209
        $region30: #{gnn_forward.7} parent=11 // pred_check_branch
          %453 = sbr.rel (%p451) target = $region32
        $region31: #{gnn_forward.7} parent=11 // pred_region
          _
        $region32: #{gnn_forward.7} parent=11 // pred_fallthru
          _
        // Predicated region
        $region33: #{gnn_forward.7} parent=11 // pred_check
          %p454 = pneg %p230
        $region34: #{gnn_forward.7} parent=11 // pred_check_branch
          %456 = sbr.rel (%p454) target = $region36
        $region35: #{gnn_forward.7} parent=11 // pred_region
          _
        $region36: #{gnn_forward.7} parent=11 // pred_fallthru
          _
        // Predicated region
        $region37: #{gnn_forward.7} parent=11 // pred_check
          %p457 = pneg %p251
        $region38: #{gnn_forward.7} parent=11 // pred_check_branch
          %459 = sbr.rel (%p457) target = $region40
        $region39: #{gnn_forward.7} parent=11 // pred_region
          _
        $region40: #{gnn_forward.7} parent=11 // pred_fallthru
          _
        // Predicated region
        $region41: #{gnn_forward.7} parent=11 // pred_check
          %p460 = pneg %p272
        $region42: #{gnn_forward.7} parent=11 // pred_check_branch
          %462 = sbr.rel (%p460) target = $region44
        $region43: #{gnn_forward.7} parent=11 // pred_region
          _
        $region44: #{gnn_forward.7} parent=11 // pred_fallthru
          _
        // Predicated region
        $region45: #{gnn_forward.7} parent=11 // pred_check
          %p463 = pneg %p293
        $region46: #{gnn_forward.7} parent=11 // pred_check_branch
          %465 = sbr.rel (%p463) target = $region48
        $region47: #{gnn_forward.7} parent=11 // pred_region
          _
        $region48: #{gnn_forward.7} parent=11 // pred_fallthru
          _
        // Predicated region
        $region49: #{gnn_forward.7} parent=11 // pred_check
          %p466 = pneg %p314
        $region50: #{gnn_forward.7} parent=11 // pred_check_branch
          %468 = sbr.rel (%p466) target = $region52
        $region51: #{gnn_forward.7} parent=11 // pred_region
          _
        $region52: #{gnn_forward.7} parent=11 // pred_fallthru
          _
        // Predicated region
        $region53: #{gnn_forward.7} parent=11 // pred_check
          %p469 = pneg %p335
        $region54: #{gnn_forward.7} parent=11 // pred_check_branch
          %471 = sbr.rel (%p469) target = $region56
        $region55: #{gnn_forward.7} parent=11 // pred_region
          _
        $region56: #{gnn_forward.7} parent=11 // pred_fallthru
          _
        // Predicated region
        $region57: #{gnn_forward.7} parent=11 // pred_check
          %p472 = pneg %p356
        $region58: #{gnn_forward.7} parent=11 // pred_check_branch
          %474 = sbr.rel (%p472) target = $region60
        $region59: #{gnn_forward.7} parent=11 // pred_region
          _
        $region60: #{gnn_forward.7} parent=11 // pred_fallthru
          _
        // Predicated region
        $region61: #{gnn_forward.7} parent=11 // pred_check
          %p475 = pneg %p377
        $region62: #{gnn_forward.7} parent=11 // pred_check_branch
          %477 = sbr.rel (%p475) target = $region64
        $region63: #{gnn_forward.7} parent=11 // pred_region
          _
        $region64: #{gnn_forward.7} parent=11 // pred_fallthru
          _
        // Predicated region
        $region65: #{gnn_forward.7} parent=11 // pred_check
          %p478 = pneg %p398
        $region66: #{gnn_forward.7} parent=11 // pred_check_branch
          %480 = sbr.rel (%p478) target = $region68
        $region67: #{gnn_forward.7} parent=11 // pred_region
          _
        $region68: #{gnn_forward.7} parent=11 // pred_fallthru
          _
      $region12: #{gnn_forward.7} parent=5 // pred_fallthru
        _
      %p481 = scmp.lt.s32.totalorder %s26, 2
      // Predicated region
      $region69: #{gnn_forward.7} parent=5 // pred_check
        %p482 = pneg %p481
      $region70: #{gnn_forward.7} parent=5 // pred_check_branch
        %484 = sbr.rel (%p482) target = $region72
      $region71: #{gnn_forward.7} parent=5 // pred_region
        // Predicated region
        $region73: #{gnn_forward.7} parent=71 // pred_check
          %p485 = pneg %p46
        $region74: #{gnn_forward.7} parent=71 // pred_check_branch
          %487 = sbr.rel (%p485) target = $region76
        $region75: #{gnn_forward.7} parent=71 // pred_region
          %p488 = scmp.lt.s32.totalorder %s26, 1
          %s489 = scalar_select %p488, %s26, 1
          %s490 = smul.addr %s489, 2
          %s491 = smul.addr %s490, 4
          %s492 = scalar_lea.vmem %s0, %s491
        $region76: #{gnn_forward.7} parent=71 // pred_fallthru
          _
        // Predicated region
        $region77: #{gnn_forward.7} parent=71 // pred_check
          %p493 = pneg %p72
        $region78: #{gnn_forward.7} parent=71 // pred_check_branch
          %495 = sbr.rel (%p493) target = $region80
        $region79: #{gnn_forward.7} parent=71 // pred_region
          %p496 = scmp.lt.s32.totalorder %s26, 1
          %s497 = scalar_select %p496, %s26, 1
          %s498 = smul.addr %s497, 2
          %s499 = smul.addr %s498, 4
          %s500 = scalar_lea.vmem %s1, %s499
        $region80: #{gnn_forward.7} parent=71 // pred_fallthru
          _
        // Predicated region
        $region81: #{gnn_forward.7} parent=71 // pred_check
          %p501 = pneg %p98
        $region82: #{gnn_forward.7} parent=71 // pred_check_branch
          %503 = sbr.rel (%p501) target = $region84
        $region83: #{gnn_forward.7} parent=71 // pred_region
          %p504 = scmp.lt.s32.totalorder %s26, 1
          %s505 = scalar_select %p504, %s26, 1
          %s506 = smul.addr %s505, 2
          %s507 = smul.addr %s506, 4
          %s508 = scalar_lea.vmem %s2, %s507
        $region84: #{gnn_forward.7} parent=71 // pred_fallthru
          _
      $region72: #{gnn_forward.7} parent=5 // pred_fallthru
        _
      %p509 = scmp.le.s32.totalorder 1, %s26
      %p510 = scmp.lt.s32.totalorder %s26, 3
      %p511 = pnand %p509, %p510
      %p512 = pneg %p511
      // Predicated region
      $region85: #{gnn_forward.7} parent=5 // pred_check
        _
      $region86: #{gnn_forward.7} parent=5 // pred_check_branch
        %514 = sbr.rel (%p511) target = $region88
      $region87: #{gnn_forward.7} parent=5 // pred_region
        %s515 = ssub.s32 %s26, 1
        %p516 = scmp.lt.s32.totalorder %s31, 1
        %s517 = scalar_select %p516, %s31, 1
        %s518 = smul.addr %s517, 2
        %s519 = smul.addr %s518, 4
        %s520 = scalar_lea.vmem %s0, %s519
        %p521 = pneg %p52
        %p522 = pneg %p49
        %p523 = scmp.lt.s32.totalorder %s31, 1
        %s524 = scalar_select %p523, %s31, 1
        %s525 = smul.addr %s524, 2
        %s526 = smul.addr %s525, 4
        %s527 = scalar_lea.vmem %s1, %s526
        %p528 = pneg %p78
        %p529 = pneg %p75
        %p530 = scmp.lt.s32.totalorder %s31, 1
        %s531 = scalar_select %p530, %s31, 1
        %s532 = smul.addr %s531, 2
        %s533 = smul.addr %s532, 4
        %s534 = scalar_lea.vmem %s2, %s533
        %p535 = pneg %p104
        %p536 = pneg %p101
        %p537 = pneg %p125
        %p538 = pneg %p122
        %p539 = pneg %p146
        %p540 = pneg %p143
        %p541 = pneg %p167
        %p542 = pneg %p164
        %p543 = pneg %p188
        %p544 = pneg %p185
        %p545 = pneg %p209
        %p546 = pneg %p206
        %p547 = pneg %p230
        %p548 = pneg %p227
        %p549 = pneg %p251
        %p550 = pneg %p248
        %p551 = pneg %p272
        %p552 = pneg %p269
        %p553 = pneg %p293
        %p554 = pneg %p290
        %p555 = pneg %p314
        %p556 = pneg %p311
        %p557 = pneg %p335
        %p558 = pneg %p332
        %p559 = pneg %p356
        %p560 = pneg %p353
        %p561 = pneg %p377
        %p562 = pneg %p374
        %p563 = pneg %p398
        %p564 = pneg %p395
        %p565 = pneg %p424
        %p566 = pneg %p421
        %s567 = sand.u32 %s411, 1
        %s568 = scalar_lea.sflag [#allocation3], %s567
        %s569 = sand.u32 %s411, 1
        %s570 = smul.addr %s569, 16
        %s571 = scalar_lea.vmem [#allocation2], %s570
        %p572 = scmp.lt.s32.totalorder %s31, 1
        %s573 = scalar_select %p572, %s31, 1
        %s574 = smul.addr %s573, 2
        %s575 = smul.addr %s574, 4
        %s576 = scalar_lea.vmem %s0, %s575
        %p577 = scmp.lt.s32.totalorder %s31, 1
        %s578 = scalar_select %p577, %s31, 1
        %s579 = smul.addr %s578, 2
        %s580 = smul.addr %s579, 4
        %s581 = scalar_lea.vmem %s1, %s580
        %p582 = scmp.lt.s32.totalorder %s31, 1
        %s583 = scalar_select %p582, %s31, 1
        %s584 = smul.addr %s583, 2
        %s585 = smul.addr %s584, 4
        %s586 = scalar_lea.vmem %s2, %s585
        %v587 = vld [vmem:[%s576] sm:$0xf]
        %v588 = vld [vmem:[%s576 + $0x4] sm:$0xf]
        %v589 = vunpack.c.l.bf16 %v587
        %v590 = vunpack.c.l.bf16 %v588
        %v591 = vld [vmem:[%s3] sm:$0x1]
        %v593 = vperm.slane %v591, 0
        %v595 = vsub.f32 %v589, %v593
        %v596 = vsub.f32 %v590, %v593
        %v597 = vld [vmem:[%s4] sm:$0x1]
        %v599 = vperm.slane %v597, 0
        %v601 = vmul.f32 %v595, %v599
        %v602 = vmul.f32 %v596, %v599
        %v603 = vld [vmem:[%s5] sm:$0x1]
        %v605 = vperm.slane %v603, 0
        %v607 = vmul.f32 %v601, %v605
        %v608 = vmul.f32 %v602, %v605
        %v609 = vld [vmem:[%s6] sm:$0x1]
        %v611 = vperm.slane %v609, 0
        %v613 = vadd.f32 %v607, %v611
        %v614 = vadd.f32 %v608, %v611
        %v615 = vpack.c.bf16 %v613, %v613
        %v616 = vpack.c.bf16 %v614, %v614
        %v617 = vld [vmem:[%s581] sm:$0xf]
        %v618 = vld [vmem:[%s581 + $0x4] sm:$0xf]
        %v619 = vunpack.c.l.bf16 %v617
        %v620 = vunpack.c.l.bf16 %v618
        %v621 = vld [vmem:[%s7] sm:$0x1]
        %v623 = vperm.slane %v621, 0
        %v625 = vsub.f32 %v619, %v623
        %v626 = vsub.f32 %v620, %v623
        %v627 = vld [vmem:[%s8] sm:$0x1]
        %v629 = vperm.slane %v627, 0
        %v631 = vmul.f32 %v625, %v629
        %v632 = vmul.f32 %v626, %v629
        %v633 = vld [vmem:[%s9] sm:$0x1]
        %v635 = vperm.slane %v633, 0
        %v637 = vmul.f32 %v631, %v635
        %v638 = vmul.f32 %v632, %v635
        %v639 = vld [vmem:[%s10] sm:$0x1]
        %v641 = vperm.slane %v639, 0
        %v643 = vadd.f32 %v637, %v641
        %v644 = vadd.f32 %v638, %v641
        %v645 = vpack.c.bf16 %v643, %v643
        %v646 = vpack.c.bf16 %v644, %v644
        %v647 = vld [vmem:[%s586] sm:$0xf]
        %v648 = vld [vmem:[%s586 + $0x4] sm:$0xf]
        %v649 = vunpack.c.l.bf16 %v647
        %v650 = vunpack.c.l.bf16 %v648
        %v651 = vld [vmem:[%s11] sm:$0x1]
        %v653 = vperm.slane %v651, 0
        %v655 = vsub.f32 %v649, %v653
        %v656 = vsub.f32 %v650, %v653
        %v657 = vld [vmem:[%s12] sm:$0x1]
        %v659 = vperm.slane %v657, 0
        %v661 = vmul.f32 %v655, %v659
        %v662 = vmul.f32 %v656, %v659
        %v663 = vld [vmem:[%s13] sm:$0x1]
        %v665 = vperm.slane %v663, 0
        %v667 = vmul.f32 %v661, %v665
        %v668 = vmul.f32 %v662, %v665
        %v669 = vld [vmem:[%s14] sm:$0x1]
        %v671 = vperm.slane %v669, 0
        %v673 = vadd.f32 %v667, %v671
        %v674 = vadd.f32 %v668, %v671
        %v675 = vpack.c.bf16 %v673, %v673
        %v676 = vpack.c.bf16 %v674, %v674
        %v679 = vunpack.c.l.b16 %v615
        %v680 = vunpack.c.l.b16 %v616
        %v681 = vpack.c.b16 %v680, %v679
        %v685 = vunpack.c.l.b16 %v645
        %v686 = vunpack.c.l.b16 %v646
        %v687 = vpack.c.b16 %v686, %v685
        %v691 = vunpack.c.l.b16 %v675
        %v692 = vunpack.c.l.b16 %v676
        %v693 = vpack.c.b16 %v692, %v691
        %v695 = vld [vmem:[%s15] sm:$0xf]
        %v696 = vld [vmem:[%s15 + $0x4] sm:$0xf]
        %v697 = vld [vmem:[%s15 + $0x8] sm:$0xf]
        %v698 = vld [vmem:[%s15 + $0xc] sm:$0xf]
        %v699 = vld [vmem:[%s15 + $0x10] sm:$0xf]
        %v700 = vld [vmem:[%s15 + $0x14] sm:$0xf]
        %v701 = vld [vmem:[%s15 + $0x18] sm:$0xf]
        %v702 = vld [vmem:[%s15 + $0x1c] sm:$0xf]
        %v703 = vld [vmem:[%s15 + $0x20] sm:$0xf]
        %v704 = vld [vmem:[%s15 + $0x24] sm:$0xf]
        %v705 = vld [vmem:[%s15 + $0x28] sm:$0xf]
        %v706 = vld [vmem:[%s15 + $0x2c] sm:$0xf]
        %v707 = vld [vmem:[%s15 + $0x30] sm:$0xf]
        %v708 = vld [vmem:[%s15 + $0x34] sm:$0xf]
        %v709 = vld [vmem:[%s15 + $0x38] sm:$0xf]
        %v710 = vld [vmem:[%s15 + $0x3c] sm:$0xf]
        %v711 = vld [vmem:[%s15 + $0x40] sm:$0xf]
        %v712 = vld [vmem:[%s15 + $0x44] sm:$0xf]
        %v713 = vld [vmem:[%s15 + $0x48] sm:$0xf]
        %v714 = vld [vmem:[%s15 + $0x4c] sm:$0xf]
        %v715 = vld [vmem:[%s15 + $0x50] sm:$0xf]
        %v716 = vld [vmem:[%s15 + $0x54] sm:$0xf]
        %v717 = vld [vmem:[%s15 + $0x58] sm:$0xf]
        %v718 = vld [vmem:[%s15 + $0x5c] sm:$0xf]
        %v719 = vld [vmem:[%s15 + $0x60] sm:$0xf]
        %v720 = vld [vmem:[%s15 + $0x64] sm:$0xf]
        %v721 = vld [vmem:[%s15 + $0x68] sm:$0xf]
        %v722 = vld [vmem:[%s15 + $0x6c] sm:$0xf]
        %v723 = vld [vmem:[%s15 + $0x70] sm:$0xf]
        %v724 = vld [vmem:[%s15 + $0x74] sm:$0xf]
        %v725 = vld [vmem:[%s15 + $0x78] sm:$0xf]
        %v726 = vld [vmem:[%s15 + $0x7c] sm:$0xf]
        %v727 = vld [vmem:[%s15 + $0x80] sm:$0xf]
        %v728 = vld [vmem:[%s15 + $0x84] sm:$0xf]
        %v729 = vld [vmem:[%s15 + $0x88] sm:$0xf]
        %v730 = vld [vmem:[%s15 + $0x8c] sm:$0xf]
        %v731 = vld [vmem:[%s15 + $0x90] sm:$0xf]
        %v732 = vld [vmem:[%s15 + $0x94] sm:$0xf]
        %v733 = vld [vmem:[%s15 + $0x98] sm:$0xf]
        %v734 = vld [vmem:[%s15 + $0x9c] sm:$0xf]
        %v735 = vld [vmem:[%s15 + $0xa0] sm:$0xf]
        %v736 = vld [vmem:[%s15 + $0xa4] sm:$0xf]
        %v737 = vld [vmem:[%s15 + $0xa8] sm:$0xf]
        %v738 = vld [vmem:[%s15 + $0xac] sm:$0xf]
        %v739 = vld [vmem:[%s15 + $0xb0] sm:$0xf]
        %v740 = vld [vmem:[%s15 + $0xb4] sm:$0xf]
        %v741 = vld [vmem:[%s15 + $0xb8] sm:$0xf]
        %v742 = vld [vmem:[%s15 + $0xbc] sm:$0xf]
        %v743 = vld [vmem:[%s16] sm:$0x1]
        %v745 = vperm.slane %v743, 0
        %v795 = vunpack.c.l.b16 %v695
        %v796 = vunpack.c.l.b16 %v696
        %v797 = vunpack.c.l.b16 %v697
        %v798 = vunpack.c.l.b16 %v698
        %v799 = vunpack.c.l.b16 %v699
        %v800 = vunpack.c.l.b16 %v700
        %v801 = vunpack.c.l.b16 %v701
        %v802 = vunpack.c.l.b16 %v702
        %v803 = vunpack.c.l.b16 %v703
        %v804 = vunpack.c.l.b16 %v704
        %v805 = vunpack.c.l.b16 %v705
        %v806 = vunpack.c.l.b16 %v706
        %v807 = vunpack.c.l.b16 %v707
        %v808 = vunpack.c.l.b16 %v708
        %v809 = vunpack.c.l.b16 %v709
        %v810 = vunpack.c.l.b16 %v710
        %v811 = vunpack.c.l.b16 %v711
        %v812 = vunpack.c.l.b16 %v712
        %v813 = vunpack.c.l.b16 %v713
        %v814 = vunpack.c.l.b16 %v714
        %v815 = vunpack.c.l.b16 %v715
        %v816 = vunpack.c.l.b16 %v716
        %v817 = vunpack.c.l.b16 %v717
        %v818 = vunpack.c.l.b16 %v718
        %v819 = vunpack.c.l.b16 %v719
        %v820 = vunpack.c.l.b16 %v720
        %v821 = vunpack.c.l.b16 %v721
        %v822 = vunpack.c.l.b16 %v722
        %v823 = vunpack.c.l.b16 %v723
        %v824 = vunpack.c.l.b16 %v724
        %v825 = vunpack.c.l.b16 %v725
        %v826 = vunpack.c.l.b16 %v726
        %v827 = vunpack.c.l.b16 %v727
        %v828 = vunpack.c.l.b16 %v728
        %v829 = vunpack.c.l.b16 %v729
        %v830 = vunpack.c.l.b16 %v730
        %v831 = vunpack.c.l.b16 %v731
        %v832 = vunpack.c.l.b16 %v732
        %v833 = vunpack.c.l.b16 %v733
        %v834 = vunpack.c.l.b16 %v734
        %v835 = vunpack.c.l.b16 %v735
        %v836 = vunpack.c.l.b16 %v736
        %v837 = vunpack.c.l.b16 %v737
        %v838 = vunpack.c.l.b16 %v738
        %v839 = vunpack.c.l.b16 %v739
        %v840 = vunpack.c.l.b16 %v740
        %v841 = vunpack.c.l.b16 %v741
        %v842 = vunpack.c.l.b16 %v742
        %v843 = vpack.c.b16 %v796, %v795
        %v844 = vpack.c.b16 %v798, %v797
        %v845 = vpack.c.b16 %v800, %v799
        %v846 = vpack.c.b16 %v802, %v801
        %v847 = vpack.c.b16 %v804, %v803
        %v848 = vpack.c.b16 %v806, %v805
        %v849 = vpack.c.b16 %v808, %v807
        %v850 = vpack.c.b16 %v810, %v809
        %v851 = vpack.c.b16 %v812, %v811
        %v852 = vpack.c.b16 %v814, %v813
        %v853 = vpack.c.b16 %v816, %v815
        %v854 = vpack.c.b16 %v818, %v817
        %v855 = vpack.c.b16 %v820, %v819
        %v856 = vpack.c.b16 %v822, %v821
        %v857 = vpack.c.b16 %v824, %v823
        %v858 = vpack.c.b16 %v826, %v825
        %v859 = vpack.c.b16 %v828, %v827
        %v860 = vpack.c.b16 %v830, %v829
        %v861 = vpack.c.b16 %v832, %v831
        %v862 = vpack.c.b16 %v834, %v833
        %v863 = vpack.c.b16 %v836, %v835
        %v864 = vpack.c.b16 %v838, %v837
        %v865 = vpack.c.b16 %v840, %v839
        %v866 = vpack.c.b16 %v842, %v841
        %891 = vmatpush.bf16.msra.mxu0 %v850
        %892 = vmatpush.bf16.msra.mxu0 %v849
        %893 = vmatpush.bf16.msra.mxu0 %v848
        %894 = vmatpush.bf16.msra.mxu0 %v847
        %895 = vmatpush.bf16.msra.mxu0 %v846
        %896 = vmatpush.bf16.msra.mxu0 %v845
        %897 = vmatpush.bf16.msra.mxu0 %v844
        %898 = vmatpush.bf16.msra.mxu0 %v843
        %899 = vmatmul.bf16.gmra.mxu0 %v681
        %v900 = vpop.f32.mrf.mxu0
        %v901 = vadd.f32 %v745, %v900
        %v902 = vpop.f32.mrf.mxu0
        %v903 = vadd.f32 %v745, %v902
        %904 = vdwg.mxu0
        %905 = vmatpush.bf16.msra.mxu0 %v858
        %906 = vmatpush.bf16.msra.mxu0 %v857
        %907 = vmatpush.bf16.msra.mxu0 %v856
        %908 = vmatpush.bf16.msra.mxu0 %v855
        %909 = vmatpush.bf16.msra.mxu0 %v854
        %910 = vmatpush.bf16.msra.mxu0 %v853
        %911 = vmatpush.bf16.msra.mxu0 %v852
        %912 = vmatpush.bf16.msra.mxu0 %v851
        %913 = vmatmul.bf16.gmra.mxu0 %v687
        %v914 = vpop.f32.mrf.mxu0
        %v915 = vadd.f32 %v901, %v914
        %v916 = vpop.f32.mrf.mxu0
        %v917 = vadd.f32 %v903, %v916
        %918 = vdwg.mxu0
        %919 = vmatpush.bf16.msra.mxu0 %v866
        %920 = vmatpush.bf16.msra.mxu0 %v865
        %921 = vmatpush.bf16.msra.mxu0 %v864
        %922 = vmatpush.bf16.msra.mxu0 %v863
        %923 = vmatpush.bf16.msra.mxu0 %v862
        %924 = vmatpush.bf16.msra.mxu0 %v861
        %925 = vmatpush.bf16.msra.mxu0 %v860
        %926 = vmatpush.bf16.msra.mxu0 %v859
        %927 = vmatmul.bf16.gmra.mxu0 %v693
        %v928 = vpop.f32.mrf.mxu0
        %v929 = vadd.f32 %v915, %v928
        %v930 = vpop.f32.mrf.mxu0
        %v931 = vadd.f32 %v917, %v930
        %932 = vdwg.mxu0
        %v933 = vmax.f32 %v929, 0.0
        %v934 = vmax.f32 %v931, 0.0
        %935 = vst [vmem:[%s571] sm:$0xff] %v933
        %936 = vst [vmem:[%s571 + $0x8] sm:$0xff] %v934
        %s937 = sand.u32 %s411, 1
        %s938 = scalar_lea.sflag [#allocation3], %s937
        %s939 = sand.u32 %s411, 1
        %s940 = smul.addr %s939, 16
        %s941 = scalar_lea.vmem [#allocation2], %s940
        // Predicated region
        $region89: #{gnn_forward.7} parent=87 // pred_check
          %p942 = pneg %p421
        $region90: #{gnn_forward.7} parent=87 // pred_check_branch
          %944 = sbr.rel (%p942) target = $region92
        $region91: #{gnn_forward.7} parent=87 // pred_region
          %946 = vsyncadd %s938, 0
          %s947 = smul.addr %s31, 2
          %s948 = smul.addr %s947, 8
          %s949 = scalar_lea.hbm %s17, %s948
          %s950 = sshll.u32 %s941, 4
          %s951 = int_to_ptr.vmem [resolvable:$true] %s950
          %s952 = sshll.u32 %s949, 4
          %s953 = int_to_ptr.hbm [resolvable:$true] %s952
          %958 = dma.vmem_to_hbm [thread:$0]  %s951, 256, %s953, %s938, 128, 128, 8
        $region92: #{gnn_forward.7} parent=87 // pred_fallthru
          _
      $region88: #{gnn_forward.7} parent=5 // pred_fallthru
        _
      %p959 = scmp.le.s32.totalorder 2, %s26
      // Predicated region
      $region93: #{gnn_forward.7} parent=5 // pred_check
        %p960 = pneg %p959
      $region94: #{gnn_forward.7} parent=5 // pred_check_branch
        %962 = sbr.rel (%p960) target = $region96
      $region95: #{gnn_forward.7} parent=5 // pred_region
        %s963 = ssub.s32 %s26, 2
        // Predicated region
        $region97: #{gnn_forward.7} parent=95 // pred_check
          %p964 = pneg %p427
        $region98: #{gnn_forward.7} parent=95 // pred_check_branch
          %966 = sbr.rel (%p964) target = $region100
        $region99: #{gnn_forward.7} parent=95 // pred_region
          %s967 = sand.u32 %s412, 1
          %s968 = scalar_lea.sflag [#allocation3], %s967
          %s969 = sand.u32 %s412, 1
          %s970 = smul.addr %s969, 16
          %s971 = scalar_lea.vmem [#allocation2], %s970
          %973 = dma.done %s968, 256
        $region100: #{gnn_forward.7} parent=95 // pred_fallthru
          _
      $region96: #{gnn_forward.7} parent=5 // pred_fallthru
        _
    $region6: #{gnn_forward.7} parent=1 // loop_footer
      %s30 = sadd.s32 1, %s26
    $region7: #{gnn_forward.7} parent=1 // loop_footer_branch
      %25 = sbr.rel target = $region3
    $region8: #{gnn_forward.7} parent=1 // loop_exit
      _
    %974 = vsyncpa [#allocation3], 1
    %s975 = scalar_lea.sflag [#allocation3], 1
    %976 = vsyncpa %s975, 1

</llo_original>
